<compile_context>
chip_gen: v7x
topology: tpu7x:2x2x1
jax: 0.10.0
libtpu: 0.0.40
codegen_flags: <defaults>
</compile_context>

<pallas_src>
import functools

import jax
import jax.numpy as jnp
from jax.experimental import pallas as pl
from jax.experimental.pallas import tpu as pltpu


def _round_up(x, m):
    return (x + m - 1) // m * m


# --------------------------------------------------------------------------
# Kernel
# --------------------------------------------------------------------------
def _gated_attn_kernel(x_ref, wab_ref, bab_ref, wc_ref, bc_ref, out_ref, *,
                       d_pad, c1_reduce, compute_dtype):
    """One row-tile of the gated attention head.

    x_ref:   (tn, L)    caller dtype (f32/bf16); cast to `compute_dtype` here
    wab_ref: (L, 2*Dp)  bf16  == [Wa || Wb]   (Dp = D padded to 128)
    bab_ref: (1, 2*Dp)  f32   == [ba || bb]
    wc_ref:  (1, Dp) f32 if c1_reduce else (Dp, C) f32
    bc_ref:  (1, C)     f32
    out_ref: (tn, C)    x dtype
    """
    x = x_ref[...].astype(compute_dtype)           # VPU cast, hidden under DMA

    # Single MXU pass over x for both gate projections; f32 accumulation.
    h = jnp.dot(x, wab_ref[...], preferred_element_type=jnp.float32)
    h = h + bab_ref[...]                            # (tn, 2*Dp) f32

    a = jnp.tanh(h[:, :d_pad])                      # (tn, Dp)  lane-aligned view
    b = jax.nn.sigmoid(h[:, d_pad:])                # (tn, Dp)
    gated = a * b                                   # f32

    if c1_reduce:
        # num_classes == 1: a (tn, Dp) @ (Dp, 1) matmul would use 1/256 of
        # the MXU output columns; VPU multiply + cross-lane reduce instead.
        attn = jnp.sum(gated * wc_ref[...], axis=-1, keepdims=True)   # (tn, 1)
    else:
        attn = jnp.dot(gated, wc_ref[...],
                       preferred_element_type=jnp.float32)            # (tn, C)

    out_ref[...] = (attn + bc_ref[...]).astype(out_ref.dtype)


# --------------------------------------------------------------------------
# One-time parameter preparation (hoisted off the per-call path)
# --------------------------------------------------------------------------
def prepare_params(wa, ba, wb, bb, wc, bc, *, stream_dtype=jnp.bfloat16):
    """wa/wb: (L, D); wc: (D, C); biases (D,)/(1,D) and (C,)/(1,C).

    Pads D up to a multiple of 128 with zeros (so the in-kernel gate split is
    a free lane-aligned view), fuses [Wa || Wb] into one streamed RHS, and
    casts the streamed weights to `stream_dtype`.  Call once at model init.
    """
    L, D = wa.shape
    C = wc.shape[-1]
    Dp = _round_up(D, 128)
    pad = Dp - D

    ba = jnp.asarray(ba).reshape(1, D).astype(jnp.float32)
    bb = jnp.asarray(bb).reshape(1, D).astype(jnp.float32)
    bc = jnp.asarray(bc).reshape(1, C).astype(jnp.float32)
    wa = jnp.asarray(wa)
    wb = jnp.asarray(wb)
    wc = jnp.asarray(wc)
    if pad:
        wa = jnp.pad(wa, ((0, 0), (0, pad)))
        wb = jnp.pad(wb, ((0, 0), (0, pad)))
        ba = jnp.pad(ba, ((0, 0), (0, pad)))
        bb = jnp.pad(bb, ((0, 0), (0, pad)))
        wc = jnp.pad(wc, ((0, pad), (0, 0)))

    w_ab = jnp.concatenate([wa, wb], axis=1).astype(stream_dtype)   # (L, 2*Dp)
    b_ab = jnp.concatenate([ba, bb], axis=1)                        # (1, 2*Dp) f32

    c1 = (C == 1)
    if c1:
        wc_arg = wc.reshape(1, Dp).astype(jnp.float32)              # (1, Dp)
    else:
        wc_arg = wc.astype(jnp.float32)                             # (Dp, C)

    return dict(w_ab=w_ab, b_ab=b_ab, wc=wc_arg, bc=bc,
                L=L, D_pad=Dp, C=C, c1=c1, compute_dtype=stream_dtype)


# --------------------------------------------------------------------------
# Tile selection + apply
# --------------------------------------------------------------------------
_VMEM_BUDGET_BYTES = 28 * 1024 * 1024   # estimated footprint cap (fits v7x)
_VMEM_LIMIT_BYTES = 40 * 1024 * 1024    # scoped limit requested from Mosaic


def _pick_row_tile(N, L, d_pad, C, x_itemsize, *, budget=_VMEM_BUDGET_BYTES,
                   max_tile=2048):
    """Largest power-of-two row tile whose estimated VMEM footprint fits."""
    def footprint(tn):
        x_io = 2 * tn * L * x_itemsize          # double-buffered x tile
        x_cast = tn * L * 2                      # in-kernel bf16 copy of x
        h = tn * 2 * d_pad * 4                   # gate pre-activations
        act = 3 * tn * d_pad * 4                 # a, b, a*b
        out_io = 2 * tn * C * 4                  # double-buffered output tile
        w = 2 * (L * 2 * d_pad * 2 + 2 * d_pad * 4 + d_pad * C * 4 + C * 4)
        return x_io + x_cast + h + act + out_io + w

    tn = 256
    while tn > 8 and footprint(tn) > budget:
        tn //= 2
    while tn < max_tile and footprint(2 * tn) <= budget:
        tn *= 2
    tn = min(tn, _round_up(max(N, 8), 8))        # don't tile far past a short x
    return max(tn, 8)


def attn_net_gated(x, params, *, tn=None):
    """Apply the gated attention head.  x: (N, L).  Returns (A, x), A: (N, C)."""
    N, L = x.shape
    assert L == params["L"], (L, params["L"])
    Dp, C, c1 = params["D_pad"], params["C"], params["c1"]

    if tn is None:
        tn = _pick_row_tile(N, L, Dp, C, jnp.dtype(x.dtype).itemsize)
    assert tn % 8 == 0

    n_blocks = pl.cdiv(N, tn)                    # ragged tail -> boundary block

    if c1:
        wc_spec = pl.BlockSpec((1, Dp), lambda i: (0, 0))
    else:
        wc_spec = pl.BlockSpec((Dp, C), lambda i: (0, 0))

    kernel = functools.partial(_gated_attn_kernel, d_pad=Dp, c1_reduce=c1,
                               compute_dtype=params["compute_dtype"])

    A = pl.pallas_call(
        kernel,
        out_shape=jax.ShapeDtypeStruct((N, C), x.dtype),
        grid_spec=pltpu.PrefetchScalarGridSpec(
            num_scalar_prefetch=0,
            grid=(n_blocks,),
            in_specs=[
                pl.BlockSpec((tn, L), lambda i: (i, 0)),       # x, caller dtype
                pl.BlockSpec((L, 2 * Dp), lambda i: (0, 0)),   # [Wa||Wb] bf16
                pl.BlockSpec((1, 2 * Dp), lambda i: (0, 0)),   # [ba||bb] f32
                wc_spec,                                       # Wc
                pl.BlockSpec((1, C), lambda i: (0, 0)),        # bc
            ],
            out_specs=pl.BlockSpec((tn, C), lambda i: (i, 0)),
        ),
        compiler_params=pltpu.CompilerParams(
            dimension_semantics=("parallel",),
            vmem_limit_bytes=_VMEM_LIMIT_BYTES),
    )(x, params["w_ab"], params["b_ab"], params["wc"], params["bc"])

    return A, x


# --------------------------------------------------------------------------
# Test harness
# --------------------------------------------------------------------------
def init_params(key, L, D, C):
    """Deterministic synthetic init (shapes match nn.Linear(L,D)/(L,D)/(D,C))."""
    ks = jax.random.split(key, 6)
    # PyTorch Linear stores weight as (out, in); we keep (in, out) for x @ W.
    wa = jax.random.normal(ks[0], (L, D), jnp.float32) * (1.0 / jnp.sqrt(L))
    ba = jax.random.normal(ks[1], (1, D), jnp.float32) * 0.01
    wb = jax.random.normal(ks[2], (L, D), jnp.float32) * (1.0 / jnp.sqrt(L))
    bb = jax.random.normal(ks[3], (1, D), jnp.float32) * 0.01
    wc = jax.random.normal(ks[4], (D, C), jnp.float32) * (1.0 / jnp.sqrt(D))
    bc = jax.random.normal(ks[5], (1, C), jnp.float32) * 0.01
    return wa, ba, wb, bb, wc, bc


def _reference_f32(x, wa, ba, wb, bb, wc, bc):
    """Full-f32 reference matching the PyTorch module."""
    hp = jax.lax.Precision.HIGHEST
    a = jnp.tanh(jnp.dot(x, wa, precision=hp) + ba.reshape(1, -1))
    b = jax.nn.sigmoid(jnp.dot(x, wb, precision=hp) + bb.reshape(1, -1))
    return jnp.dot(a * b, wc, precision=hp) + bc.reshape(1, -1)


if __name__ == "__main__":
    key = jax.random.PRNGKey(0)
    k_x, k_p, k_x2, k_p2 = jax.random.split(key, 4)

    # --- case 1: num_classes=1, lane-aligned D, N a multiple of the tile ----
    N, L, D, C = 512, 256, 128, 1
    x = jax.random.normal(k_x, (N, L), jnp.float32)
    wa, ba, wb, bb, wc, bc = init_params(k_p, L, D, C)
    params = prepare_params(wa, ba, wb, bb, wc, bc)      # one-time weight prep

    A, x_out = attn_net_gated(x, params)
    A = jax.block_until_ready(A)

    A_ref = _reference_f32(x, wa, ba, wb, bb, wc, bc)
    assert A.shape == (N, C)
    err = float(jnp.max(jnp.abs(A - A_ref)))
    # bf16-streamed x/Wa/Wb with f32 accumulation vs. a full-f32 module.
    assert jnp.allclose(A, A_ref, atol=5e-2, rtol=2e-2), err
    assert x_out is x                                    # x passes through as-is

    # --- case 2: ragged N, D not a multiple of 128, num_classes > 1 ---------
    N2, L2, D2, C2 = 300, 256, 200, 3
    x2 = jax.random.normal(k_x2, (N2, L2), jnp.float32)
    wa2, ba2, wb2, bb2, wc2, bc2 = init_params(k_p2, L2, D2, C2)
    params2 = prepare_params(wa2, ba2, wb2, bb2, wc2, bc2)

    A2, x2_out = attn_net_gated(x2, params2)
    A2 = jax.block_until_ready(A2)

    A2_ref = _reference_f32(x2, wa2, ba2, wb2, bb2, wc2, bc2)
    assert A2.shape == (N2, C2)
    err2 = float(jnp.max(jnp.abs(A2 - A2_ref)))
    assert jnp.allclose(A2, A2_ref, atol=5e-2, rtol=2e-2), err2
    assert x2_out is x2

    print("KERNEL_OK")
</pallas_src>

<mosaic_0001>
module attributes {stable_mosaic.version = 11 : i64} {
  func.func @_gated_attn_kernel(%arg0: i32, %arg1: memref<512x256xf32, #tpu.memory_space<vmem>>, %arg2: memref<256x256xbf16, #tpu.memory_space<vmem>>, %arg3: memref<1x256xf32, #tpu.memory_space<vmem>>, %arg4: memref<1x128xf32, #tpu.memory_space<vmem>>, %arg5: memref<1x1xf32, #tpu.memory_space<vmem>>, %arg6: memref<512x1xf32, #tpu.memory_space<vmem>>) attributes {dimension_semantics = [#tpu.dimension_semantics<parallel>], iteration_bounds = array<i64: 1>, scalar_prefetch = 0 : i64, scratch_operands = 0 : i64, tpu.core_type = #tpu.core_type<tc>, window_params = [{transform_indices = @transform_0, window_bounds = array<i64: 512, 256>}, {pipeline_mode = #tpu.pipeline_mode<synchronous>, transform_indices = @transform_1, window_bounds = array<i64: 256, 256>}, {pipeline_mode = #tpu.pipeline_mode<synchronous>, transform_indices = @transform_2, window_bounds = array<i64: 1, 256>}, {pipeline_mode = #tpu.pipeline_mode<synchronous>, transform_indices = @transform_3, window_bounds = array<i64: 1, 128>}, {pipeline_mode = #tpu.pipeline_mode<synchronous>, transform_indices = @transform_4, window_bounds = array<i64: 1, 1>}, {transform_indices = @transform_5, window_bounds = array<i64: 512, 1>}]} {
    %c0 = arith.constant 0 : index
    %c0_0 = arith.constant 0 : index
    %0 = vector.load %arg1[%c0, %c0_0] : memref<512x256xf32, #tpu.memory_space<vmem>>, vector<512x256xf32>
    %1 = arith.truncf %0 : vector<512x256xf32> to vector<512x256xbf16>
    %c0_1 = arith.constant 0 : index
    %c0_2 = arith.constant 0 : index
    %2 = vector.load %arg2[%c0_1, %c0_2] : memref<256x256xbf16, #tpu.memory_space<vmem>>, vector<256x256xbf16>
    %cst = arith.constant dense<0.000000e+00> : vector<512x256xf32>
    %3 = tpu.matmul %1, %2, %cst {dimension_numbers = #tpu.dot_dimension_numbers<[1], [0], [0], [1], [0, 0, 1, 1], [], []>} : vector<512x256xbf16>, vector<256x256xbf16>, vector<512x256xf32> -> vector<512x256xf32>
    %c0_3 = arith.constant 0 : index
    %c0_4 = arith.constant 0 : index
    %4 = vector.load %arg3[%c0_3, %c0_4] : memref<1x256xf32, #tpu.memory_space<vmem>>, vector<1x256xf32>
    %5 = vector.broadcast %4 : vector<1x256xf32> to vector<512x256xf32>
    %6 = arith.addf %3, %5 : vector<512x256xf32>
    %7 = vector.extract_strided_slice %6 {offsets = [0, 0], sizes = [512, 128], strides = [1, 1]} : vector<512x256xf32> to vector<512x128xf32>
    %8 = math.tanh %7 : vector<512x128xf32>
    %9 = vector.extract_strided_slice %6 {offsets = [0, 128], sizes = [512, 128], strides = [1, 1]} : vector<512x256xf32> to vector<512x128xf32>
    %10 = arith.negf %9 : vector<512x128xf32>
    %11 = math.exp %10 : vector<512x128xf32>
    %cst_5 = arith.constant 1.000000e+00 : f32
    %12 = vector.broadcast %cst_5 : f32 to vector<512x128xf32>
    %13 = arith.addf %12, %11 : vector<512x128xf32>
    %14 = arith.divf %12, %13 : vector<512x128xf32>
    %15 = arith.mulf %8, %14 : vector<512x128xf32>
    %c0_6 = arith.constant 0 : index
    %c0_7 = arith.constant 0 : index
    %16 = vector.load %arg4[%c0_6, %c0_7] : memref<1x128xf32, #tpu.memory_space<vmem>>, vector<1x128xf32>
    %17 = vector.broadcast %16 : vector<1x128xf32> to vector<512x128xf32>
    %18 = arith.mulf %15, %17 : vector<512x128xf32>
    %cst_8 = arith.constant dense<0.000000e+00> : vector<512xf32>
    %19 = vector.multi_reduction <add>, %18, %cst_8 [1] : vector<512x128xf32> to vector<512xf32>
    %20 = vector.shape_cast %19 : vector<512xf32> to vector<512x1xf32>
    %c0_9 = arith.constant 0 : index
    %c0_10 = arith.constant 0 : index
    %21 = vector.load %arg5[%c0_9, %c0_10] : memref<1x1xf32, #tpu.memory_space<vmem>>, vector<1x1xf32>
    %22 = vector.broadcast %21 : vector<1x1xf32> to vector<512x1xf32>
    %23 = arith.addf %20, %22 : vector<512x1xf32>
    %c0_11 = arith.constant 0 : index
    %c0_12 = arith.constant 0 : index
    %24 = vector.load %arg6[%c0_11, %c0_12] : memref<512x1xf32, #tpu.memory_space<vmem>>, vector<512x1xf32>
    tpu.vector_store %arg6[%c0_11, %c0_12], %23 {strides = array<i32>} : memref<512x1xf32, #tpu.memory_space<vmem>>, vector<512x1xf32>,
    return
  }
  func.func @transform_0(%arg0: i32) -> (i32, i32) {
    %c0_i32 = arith.constant 0 : i32
    %c0_i32_0 = arith.constant 0 : i32
    return %arg0, %c0_i32 : i32, i32
  }
  func.func @transform_1(%arg0: i32) -> (i32, i32) {
    %c0_i32 = arith.constant 0 : i32
    %c0_i32_0 = arith.constant 0 : i32
    %c0_i32_1 = arith.constant 0 : i32
    return %c0_i32, %c0_i32_0 : i32, i32
  }
  func.func @transform_2(%arg0: i32) -> (i32, i32) {
    %c0_i32 = arith.constant 0 : i32
    %c0_i32_0 = arith.constant 0 : i32
    %c0_i32_1 = arith.constant 0 : i32
    return %c0_i32, %c0_i32_0 : i32, i32
  }
  func.func @transform_3(%arg0: i32) -> (i32, i32) {
    %c0_i32 = arith.constant 0 : i32
    %c0_i32_0 = arith.constant 0 : i32
    %c0_i32_1 = arith.constant 0 : i32
    return %c0_i32, %c0_i32_0 : i32, i32
  }
  func.func @transform_4(%arg0: i32) -> (i32, i32) {
    %c0_i32 = arith.constant 0 : i32
    %c0_i32_0 = arith.constant 0 : i32
    %c0_i32_1 = arith.constant 0 : i32
    return %c0_i32, %c0_i32_0 : i32, i32
  }
  func.func @transform_5(%arg0: i32) -> (i32, i32) {
    %c0_i32 = arith.constant 0 : i32
    %c0_i32_0 = arith.constant 0 : i32
    return %arg0, %c0_i32 : i32, i32
  }
}

</mosaic_0001>

<llo_original>
// kernel: tpu_custom_call.1
$region0: #{tpu_custom_call.1}
  #allocation0 [shape = 'u32[]', space=smem, size = 0x4, offset = 0x4, fixed_abs, tag = 'smem constant byte address 0x4 - core index']
  #allocation1 [shape = 'u32[144,128]{1,0:T(1,128)}', space=vmem, size = 0x12000, scoped, tag = 'internal scratch']
  #allocation2 [shape = 'f32[1,1]{1,0:T(1,128)S(1)}', space=vmem, size = 0x200, scoped, tag = 'scoped memory for tpu_custom_call.1']
  %s0 = inlined_call_operand.hbm [shape: f32[512,256], index: 0, kind: input, shape index: {}]
  %s1 = inlined_call_operand.hbm [shape: bf16[256,256], index: 1, kind: input, shape index: {}]
  %s2 = inlined_call_operand.vmem [shape: f32[1,256], index: 2, kind: input, shape index: {}]
  %s3 = inlined_call_operand.vmem [shape: f32[1,128], index: 3, kind: input, shape index: {}]
  %s4 = inlined_call_operand.<no memory space> [shape: f32[1,1], index: 4, kind: input, shape index: {}]
  %s5 = inlined_call_operand.vmem [shape: f32[512,1], index: 5, kind: output, shape index: {}]
  %s6 = sld [smem:[#allocation0]]
  $region38: #{tpu_custom_call.1} parent=0
    _
  %s8 = ssub.s32 1, %s6
  %s9 = scalar_select 0, %s8, %s6
  %v10 = vstv %s4
  %11 = vst [vmem:[#allocation2] sm:$0x1] %v10
  $region1: #{tpu_custom_call.1} parent=0
    #allocation3 [shape = 'u8[524288]{0}', space=vmem, size = 0x80000, scoped, tag = 'input window, operand 0, single buffered']
    #allocation4 [shape = 's32[1]{0}', space=sflag, size = 0x4, scoped, tag = 'scoped memory for tpu_custom_call.1']
    #allocation5 [shape = 'u8[131072]{0}', space=vmem, size = 0x20000, scoped, tag = 'input window, operand 1, single buffered']
    #allocation6 [shape = 's32[1]{0}', space=sflag, size = 0x4, scoped, tag = 'scoped memory for tpu_custom_call.1']
    %12 = vsyncpa [#allocation4], 0
    %13 = vsyncpa [#allocation6], 0
    // Predicated region
    $region2: #{tpu_custom_call.1} parent=1 // pred_check
      _
    $region3: #{tpu_custom_call.1} parent=1 // pred_check_branch
      %15 = sbr.rel (0) target = $region5
    $region4: #{tpu_custom_call.1} parent=1 // pred_region
      %s17 = ssub.s32 16384, 16384
      %18 = vsyncadd [#allocation4], %s17
      %s19 = sshll.u32 [#allocation3], 4
      %s20 = int_to_ptr.vmem [resolvable:$true] %s19
      %25 = dma.hbm_to_vmem [thread:$0]  %s0, 16384, %s20, [#allocation4], 256, 256, 16
    $region5: #{tpu_custom_call.1} parent=1 // pred_fallthru
      _
    // Predicated region
    $region6: #{tpu_custom_call.1} parent=1 // pred_check
      _
    $region7: #{tpu_custom_call.1} parent=1 // pred_check_branch
      %27 = sbr.rel (0) target = $region9
    $region8: #{tpu_custom_call.1} parent=1 // pred_region
      %s29 = ssub.s32 4096, 4096
      %30 = vsyncadd [#allocation6], %s29
      %s31 = sshll.u32 [#allocation5], 4
      %s32 = int_to_ptr.vmem [resolvable:$true] %s31
      %37 = dma.hbm_to_vmem [thread:$0]  %s1, 4096, %s32, [#allocation6], 128, 128, 8
    $region9: #{tpu_custom_call.1} parent=1 // pred_fallthru
      _
    // Predicated region
    $region10: #{tpu_custom_call.1} parent=1 // pred_check
      _
    $region11: #{tpu_custom_call.1} parent=1 // pred_check_branch
      %39 = sbr.rel (0) target = $region13
    $region12: #{tpu_custom_call.1} parent=1 // pred_region
      _
    $region13: #{tpu_custom_call.1} parent=1 // pred_fallthru
      _
    // Predicated region
    $region14: #{tpu_custom_call.1} parent=1 // pred_check
      _
    $region15: #{tpu_custom_call.1} parent=1 // pred_check_branch
      %41 = sbr.rel (0) target = $region17
    $region16: #{tpu_custom_call.1} parent=1 // pred_region
      _
    $region17: #{tpu_custom_call.1} parent=1 // pred_fallthru
      _
    // Predicated region
    $region18: #{tpu_custom_call.1} parent=1 // pred_check
      _
    $region19: #{tpu_custom_call.1} parent=1 // pred_check_branch
      %43 = sbr.rel (0) target = $region21
    $region20: #{tpu_custom_call.1} parent=1 // pred_region
      _
    $region21: #{tpu_custom_call.1} parent=1 // pred_fallthru
      _
    // Predicated region
    $region22: #{tpu_custom_call.1} parent=1 // pred_check
      _
    $region23: #{tpu_custom_call.1} parent=1 // pred_check_branch
      %45 = sbr.rel (0) target = $region25
    $region24: #{tpu_custom_call.1} parent=1 // pred_region
      %46 = dma.done [#allocation4], 16384
    $region25: #{tpu_custom_call.1} parent=1 // pred_fallthru
      _
    // Predicated region
    $region26: #{tpu_custom_call.1} parent=1 // pred_check
      _
    $region27: #{tpu_custom_call.1} parent=1 // pred_check_branch
      %48 = sbr.rel (0) target = $region29
    $region28: #{tpu_custom_call.1} parent=1 // pred_region
      %49 = dma.done [#allocation6], 4096
    $region29: #{tpu_custom_call.1} parent=1 // pred_fallthru
      _
    %v50 = vld [vmem:[#allocation3] sm:$0xff]
    %v51 = vld [vmem:[#allocation3 + $0x8] sm:$0xff]
    %v52 = vld [vmem:[#allocation3 + $0x10] sm:$0xff]
    %v53 = vld [vmem:[#allocation3 + $0x18] sm:$0xff]
    %v54 = vld [vmem:[#allocation3 + $0x20] sm:$0xff]
    %v55 = vld [vmem:[#allocation3 + $0x28] sm:$0xff]
    %v56 = vld [vmem:[#allocation3 + $0x30] sm:$0xff]
    %v57 = vld [vmem:[#allocation3 + $0x38] sm:$0xff]
    %v58 = vld [vmem:[#allocation3 + $0x40] sm:$0xff]
    %v59 = vld [vmem:[#allocation3 + $0x48] sm:$0xff]
    %v60 = vld [vmem:[#allocation3 + $0x50] sm:$0xff]
    %v61 = vld [vmem:[#allocation3 + $0x58] sm:$0xff]
    %v62 = vld [vmem:[#allocation3 + $0x60] sm:$0xff]
    %v63 = vld [vmem:[#allocation3 + $0x68] sm:$0xff]
    %v64 = vld [vmem:[#allocation3 + $0x70] sm:$0xff]
    %v65 = vld [vmem:[#allocation3 + $0x78] sm:$0xff]
    %v66 = vld [vmem:[#allocation3 + $0x80] sm:$0xff]
    %v67 = vld [vmem:[#allocation3 + $0x88] sm:$0xff]
    %v68 = vld [vmem:[#allocation3 + $0x90] sm:$0xff]
    %v69 = vld [vmem:[#allocation3 + $0x98] sm:$0xff]
    %v70 = vld [vmem:[#allocation3 + $0xa0] sm:$0xff]
    %v71 = vld [vmem:[#allocation3 + $0xa8] sm:$0xff]
    %v72 = vld [vmem:[#allocation3 + $0xb0] sm:$0xff]
    %v73 = vld [vmem:[#allocation3 + $0xb8] sm:$0xff]
    %v74 = vld [vmem:[#allocation3 + $0xc0] sm:$0xff]
    %v75 = vld [vmem:[#allocation3 + $0xc8] sm:$0xff]
    %v76 = vld [vmem:[#allocation3 + $0xd0] sm:$0xff]
    %v77 = vld [vmem:[#allocation3 + $0xd8] sm:$0xff]
    %v78 = vld [vmem:[#allocation3 + $0xe0] sm:$0xff]
    %v79 = vld [vmem:[#allocation3 + $0xe8] sm:$0xff]
    %v80 = vld [vmem:[#allocation3 + $0xf0] sm:$0xff]
    %v81 = vld [vmem:[#allocation3 + $0xf8] sm:$0xff]
    %v82 = vld [vmem:[#allocation3 + $0x100] sm:$0xff]
    %v83 = vld [vmem:[#allocation3 + $0x108] sm:$0xff]
    %v84 = vld [vmem:[#allocation3 + $0x110] sm:$0xff]
    %v85 = vld [vmem:[#allocation3 + $0x118] sm:$0xff]
    %v86 = vld [vmem:[#allocation3 + $0x120] sm:$0xff]
    %v87 = vld [vmem:[#allocation3 + $0x128] sm:$0xff]
    %v88 = vld [vmem:[#allocation3 + $0x130] sm:$0xff]
    %v89 = vld [vmem:[#allocation3 + $0x138] sm:$0xff]
    %v90 = vld [vmem:[#allocation3 + $0x140] sm:$0xff]
    %v91 = vld [vmem:[#allocation3 + $0x148] sm:$0xff]
    %v92 = vld [vmem:[#allocation3 + $0x150] sm:$0xff]
    %v93 = vld [vmem:[#allocation3 + $0x158] sm:$0xff]
    %v94 = vld [vmem:[#allocation3 + $0x160] sm:$0xff]
    %v95 = vld [vmem:[#allocation3 + $0x168] sm:$0xff]
    %v96 = vld [vmem:[#allocation3 + $0x170] sm:$0xff]
    %v97 = vld [vmem:[#allocation3 + $0x178] sm:$0xff]
    %v98 = vld [vmem:[#allocation3 + $0x180] sm:$0xff]
    %v99 = vld [vmem:[#allocation3 + $0x188] sm:$0xff]
    %v100 = vld [vmem:[#allocation3 + $0x190] sm:$0xff]
    %v101 = vld [vmem:[#allocation3 + $0x198] sm:$0xff]
    %v102 = vld [vmem:[#allocation3 + $0x1a0] sm:$0xff]
    %v103 = vld [vmem:[#allocation3 + $0x1a8] sm:$0xff]
    %v104 = vld [vmem:[#allocation3 + $0x1b0] sm:$0xff]
    %v105 = vld [vmem:[#allocation3 + $0x1b8] sm:$0xff]
    %v106 = vld [vmem:[#allocation3 + $0x1c0] sm:$0xff]
    %v107 = vld [vmem:[#allocation3 + $0x1c8] sm:$0xff]
    %v108 = vld [vmem:[#allocation3 + $0x1d0] sm:$0xff]
    %v109 = vld [vmem:[#allocation3 + $0x1d8] sm:$0xff]
    %v110 = vld [vmem:[#allocation3 + $0x1e0] sm:$0xff]
    %v111 = vld [vmem:[#allocation3 + $0x1e8] sm:$0xff]
    %v112 = vld [vmem:[#allocation3 + $0x1f0] sm:$0xff]
    %v113 = vld [vmem:[#allocation3 + $0x1f8] sm:$0xff]
    %v114 = vld [vmem:[#allocation3 + $0x200] sm:$0xff]
    %v115 = vld [vmem:[#allocation3 + $0x208] sm:$0xff]
    %v116 = vld [vmem:[#allocation3 + $0x210] sm:$0xff]
    %v117 = vld [vmem:[#allocation3 + $0x218] sm:$0xff]
    %v118 = vld [vmem:[#allocation3 + $0x220] sm:$0xff]
    %v119 = vld [vmem:[#allocation3 + $0x228] sm:$0xff]
    %v120 = vld [vmem:[#allocation3 + $0x230] sm:$0xff]
    %v121 = vld [vmem:[#allocation3 + $0x238] sm:$0xff]
    %v122 = vld [vmem:[#allocation3 + $0x240] sm:$0xff]
    %v123 = vld [vmem:[#allocation3 + $0x248] sm:$0xff]
    %v124 = vld [vmem:[#allocation3 + $0x250] sm:$0xff]
    %v125 = vld [vmem:[#allocation3 + $0x258] sm:$0xff]
    %v126 = vld [vmem:[#allocation3 + $0x260] sm:$0xff]
    %v127 = vld [vmem:[#allocation3 + $0x268] sm:$0xff]
    %v128 = vld [vmem:[#allocation3 + $0x270] sm:$0xff]
    %v129 = vld [vmem:[#allocation3 + $0x278] sm:$0xff]
    %v130 = vld [vmem:[#allocation3 + $0x280] sm:$0xff]
    %v131 = vld [vmem:[#allocation3 + $0x288] sm:$0xff]
    %v132 = vld [vmem:[#allocation3 + $0x290] sm:$0xff]
    %v133 = vld [vmem:[#allocation3 + $0x298] sm:$0xff]
    %v134 = vld [vmem:[#allocation3 + $0x2a0] sm:$0xff]
    %v135 = vld [vmem:[#allocation3 + $0x2a8] sm:$0xff]
    %v136 = vld [vmem:[#allocation3 + $0x2b0] sm:$0xff]
    %v137 = vld [vmem:[#allocation3 + $0x2b8] sm:$0xff]
    %v138 = vld [vmem:[#allocation3 + $0x2c0] sm:$0xff]
    %v139 = vld [vmem:[#allocation3 + $0x2c8] sm:$0xff]
    %v140 = vld [vmem:[#allocation3 + $0x2d0] sm:$0xff]
    %v141 = vld [vmem:[#allocation3 + $0x2d8] sm:$0xff]
    %v142 = vld [vmem:[#allocation3 + $0x2e0] sm:$0xff]
    %v143 = vld [vmem:[#allocation3 + $0x2e8] sm:$0xff]
    %v144 = vld [vmem:[#allocation3 + $0x2f0] sm:$0xff]
    %v145 = vld [vmem:[#allocation3 + $0x2f8] sm:$0xff]
    %v146 = vld [vmem:[#allocation3 + $0x300] sm:$0xff]
    %v147 = vld [vmem:[#allocation3 + $0x308] sm:$0xff]
    %v148 = vld [vmem:[#allocation3 + $0x310] sm:$0xff]
    %v149 = vld [vmem:[#allocation3 + $0x318] sm:$0xff]
    %v150 = vld [vmem:[#allocation3 + $0x320] sm:$0xff]
    %v151 = vld [vmem:[#allocation3 + $0x328] sm:$0xff]
    %v152 = vld [vmem:[#allocation3 + $0x330] sm:$0xff]
    %v153 = vld [vmem:[#allocation3 + $0x338] sm:$0xff]
    %v154 = vld [vmem:[#allocation3 + $0x340] sm:$0xff]
    %v155 = vld [vmem:[#allocation3 + $0x348] sm:$0xff]
    %v156 = vld [vmem:[#allocation3 + $0x350] sm:$0xff]
    %v157 = vld [vmem:[#allocation3 + $0x358] sm:$0xff]
    %v158 = vld [vmem:[#allocation3 + $0x360] sm:$0xff]
    %v159 = vld [vmem:[#allocation3 + $0x368] sm:$0xff]
    %v160 = vld [vmem:[#allocation3 + $0x370] sm:$0xff]
    %v161 = vld [vmem:[#allocation3 + $0x378] sm:$0xff]
    %v162 = vld [vmem:[#allocation3 + $0x380] sm:$0xff]
    %v163 = vld [vmem:[#allocation3 + $0x388] sm:$0xff]
    %v164 = vld [vmem:[#allocation3 + $0x390] sm:$0xff]
    %v165 = vld [vmem:[#allocation3 + $0x398] sm:$0xff]
    %v166 = vld [vmem:[#allocation3 + $0x3a0] sm:$0xff]
    %v167 = vld [vmem:[#allocation3 + $0x3a8] sm:$0xff]
    %v168 = vld [vmem:[#allocation3 + $0x3b0] sm:$0xff]
    %v169 = vld [vmem:[#allocation3 + $0x3b8] sm:$0xff]
    %v170 = vld [vmem:[#allocation3 + $0x3c0] sm:$0xff]
    %v171 = vld [vmem:[#allocation3 + $0x3c8] sm:$0xff]
    %v172 = vld [vmem:[#allocation3 + $0x3d0] sm:$0xff]
    %v173 = vld [vmem:[#allocation3 + $0x3d8] sm:$0xff]
    %v174 = vld [vmem:[#allocation3 + $0x3e0] sm:$0xff]
    %v175 = vld [vmem:[#allocation3 + $0x3e8] sm:$0xff]
    %v176 = vld [vmem:[#allocation3 + $0x3f0] sm:$0xff]
    %v177 = vld [vmem:[#allocation3 + $0x3f8] sm:$0xff]
    %v178 = vpack.c.bf16 %v52, %v50
    %v179 = vpack.c.bf16 %v53, %v51
    %v180 = vpack.c.bf16 %v56, %v54
    %v181 = vpack.c.bf16 %v57, %v55
    %v182 = vpack.c.bf16 %v60, %v58
    %v183 = vpack.c.bf16 %v61, %v59
    %v184 = vpack.c.bf16 %v64, %v62
    %v185 = vpack.c.bf16 %v65, %v63
    %v186 = vpack.c.bf16 %v68, %v66
    %v187 = vpack.c.bf16 %v69, %v67
    %v188 = vpack.c.bf16 %v72, %v70
    %v189 = vpack.c.bf16 %v73, %v71
    %v190 = vpack.c.bf16 %v76, %v74
    %v191 = vpack.c.bf16 %v77, %v75
    %v192 = vpack.c.bf16 %v80, %v78
    %v193 = vpack.c.bf16 %v81, %v79
    %v194 = vpack.c.bf16 %v84, %v82
    %v195 = vpack.c.bf16 %v85, %v83
    %v196 = vpack.c.bf16 %v88, %v86
    %v197 = vpack.c.bf16 %v89, %v87
    %v198 = vpack.c.bf16 %v92, %v90
    %v199 = vpack.c.bf16 %v93, %v91
    %v200 = vpack.c.bf16 %v96, %v94
    %v201 = vpack.c.bf16 %v97, %v95
    %v202 = vpack.c.bf16 %v100, %v98
    %v203 = vpack.c.bf16 %v101, %v99
    %v204 = vpack.c.bf16 %v104, %v102
    %v205 = vpack.c.bf16 %v105, %v103
    %v206 = vpack.c.bf16 %v108, %v106
    %v207 = vpack.c.bf16 %v109, %v107
    %v208 = vpack.c.bf16 %v112, %v110
    %v209 = vpack.c.bf16 %v113, %v111
    %v210 = vpack.c.bf16 %v116, %v114
    %v211 = vpack.c.bf16 %v117, %v115
    %v212 = vpack.c.bf16 %v120, %v118
    %v213 = vpack.c.bf16 %v121, %v119
    %v214 = vpack.c.bf16 %v124, %v122
    %v215 = vpack.c.bf16 %v125, %v123
    %v216 = vpack.c.bf16 %v128, %v126
    %v217 = vpack.c.bf16 %v129, %v127
    %v218 = vpack.c.bf16 %v132, %v130
    %v219 = vpack.c.bf16 %v133, %v131
    %v220 = vpack.c.bf16 %v136, %v134
    %v221 = vpack.c.bf16 %v137, %v135
    %v222 = vpack.c.bf16 %v140, %v138
    %v223 = vpack.c.bf16 %v141, %v139
    %v224 = vpack.c.bf16 %v144, %v142
    %v225 = vpack.c.bf16 %v145, %v143
    %v226 = vpack.c.bf16 %v148, %v146
    %v227 = vpack.c.bf16 %v149, %v147
    %v228 = vpack.c.bf16 %v152, %v150
    %v229 = vpack.c.bf16 %v153, %v151
    %v230 = vpack.c.bf16 %v156, %v154
    %v231 = vpack.c.bf16 %v157, %v155
    %v232 = vpack.c.bf16 %v160, %v158
    %v233 = vpack.c.bf16 %v161, %v159
    %v234 = vpack.c.bf16 %v164, %v162
    %v235 = vpack.c.bf16 %v165, %v163
    %v236 = vpack.c.bf16 %v168, %v166
    %v237 = vpack.c.bf16 %v169, %v167
    %v238 = vpack.c.bf16 %v172, %v170
    %v239 = vpack.c.bf16 %v173, %v171
    %v240 = vpack.c.bf16 %v176, %v174
    %v241 = vpack.c.bf16 %v177, %v175
    %v242 = vld [vmem:[#allocation5] sm:$0xff]
    %v243 = vld [vmem:[#allocation5 + $0x8] sm:$0xff]
    %v244 = vld [vmem:[#allocation5 + $0x10] sm:$0xff]
    %v245 = vld [vmem:[#allocation5 + $0x18] sm:$0xff]
    %v246 = vld [vmem:[#allocation5 + $0x20] sm:$0xff]
    %v247 = vld [vmem:[#allocation5 + $0x28] sm:$0xff]
    %v248 = vld [vmem:[#allocation5 + $0x30] sm:$0xff]
    %v249 = vld [vmem:[#allocation5 + $0x38] sm:$0xff]
    %v250 = vld [vmem:[#allocation5 + $0x40] sm:$0xff]
    %v251 = vld [vmem:[#allocation5 + $0x48] sm:$0xff]
    %v252 = vld [vmem:[#allocation5 + $0x50] sm:$0xff]
    %v253 = vld [vmem:[#allocation5 + $0x58] sm:$0xff]
    %v254 = vld [vmem:[#allocation5 + $0x60] sm:$0xff]
    %v255 = vld [vmem:[#allocation5 + $0x68] sm:$0xff]
    %v256 = vld [vmem:[#allocation5 + $0x70] sm:$0xff]
    %v257 = vld [vmem:[#allocation5 + $0x78] sm:$0xff]
    %v258 = vld [vmem:[#allocation5 + $0x80] sm:$0xff]
    %v259 = vld [vmem:[#allocation5 + $0x88] sm:$0xff]
    %v260 = vld [vmem:[#allocation5 + $0x90] sm:$0xff]
    %v261 = vld [vmem:[#allocation5 + $0x98] sm:$0xff]
    %v262 = vld [vmem:[#allocation5 + $0xa0] sm:$0xff]
    %v263 = vld [vmem:[#allocation5 + $0xa8] sm:$0xff]
    %v264 = vld [vmem:[#allocation5 + $0xb0] sm:$0xff]
    %v265 = vld [vmem:[#allocation5 + $0xb8] sm:$0xff]
    %v266 = vld [vmem:[#allocation5 + $0xc0] sm:$0xff]
    %v267 = vld [vmem:[#allocation5 + $0xc8] sm:$0xff]
    %v268 = vld [vmem:[#allocation5 + $0xd0] sm:$0xff]
    %v269 = vld [vmem:[#allocation5 + $0xd8] sm:$0xff]
    %v270 = vld [vmem:[#allocation5 + $0xe0] sm:$0xff]
    %v271 = vld [vmem:[#allocation5 + $0xe8] sm:$0xff]
    %v272 = vld [vmem:[#allocation5 + $0xf0] sm:$0xff]
    %v273 = vld [vmem:[#allocation5 + $0xf8] sm:$0xff]
    %v274 = vld [vmem:[%s2] sm:$0x3]
    %v276 = vlaneseq
    %v277 = vshrl.u32 %v276, 7
    %v278 = vsub.s32 0, %v277
    %v279 = vrot.slane %v274, %v278
    %v280 = vlaneseq
    %v281 = vshrl.u32 %v280, 7
    %v282 = vsub.s32 1, %v281
    %v283 = vrot.slane %v274, %v282
    %v318 = vunpack.c.l.b16 %v242
    %v319 = vunpack.c.h.b16 %v242
    %v320 = vunpack.c.l.b16 %v243
    %v321 = vunpack.c.h.b16 %v243
    %v322 = vunpack.c.l.b16 %v244
    %v323 = vunpack.c.h.b16 %v244
    %v324 = vunpack.c.l.b16 %v245
    %v325 = vunpack.c.h.b16 %v245
    %v326 = vunpack.c.l.b16 %v246
    %v327 = vunpack.c.h.b16 %v246
    %v328 = vunpack.c.l.b16 %v247
    %v329 = vunpack.c.h.b16 %v247
    %v330 = vunpack.c.l.b16 %v248
    %v331 = vunpack.c.h.b16 %v248
    %v332 = vunpack.c.l.b16 %v249
    %v333 = vunpack.c.h.b16 %v249
    %v334 = vunpack.c.l.b16 %v250
    %v335 = vunpack.c.h.b16 %v250
    %v336 = vunpack.c.l.b16 %v251
    %v337 = vunpack.c.h.b16 %v251
    %v338 = vunpack.c.l.b16 %v252
    %v339 = vunpack.c.h.b16 %v252
    %v340 = vunpack.c.l.b16 %v253
    %v341 = vunpack.c.h.b16 %v253
    %v342 = vunpack.c.l.b16 %v254
    %v343 = vunpack.c.h.b16 %v254
    %v344 = vunpack.c.l.b16 %v255
    %v345 = vunpack.c.h.b16 %v255
    %v346 = vunpack.c.l.b16 %v256
    %v347 = vunpack.c.h.b16 %v256
    %v348 = vunpack.c.l.b16 %v257
    %v349 = vunpack.c.h.b16 %v257
    %v350 = vunpack.c.l.b16 %v258
    %v351 = vunpack.c.h.b16 %v258
    %v352 = vunpack.c.l.b16 %v259
    %v353 = vunpack.c.h.b16 %v259
    %v354 = vunpack.c.l.b16 %v260
    %v355 = vunpack.c.h.b16 %v260
    %v356 = vunpack.c.l.b16 %v261
    %v357 = vunpack.c.h.b16 %v261
    %v358 = vunpack.c.l.b16 %v262
    %v359 = vunpack.c.h.b16 %v262
    %v360 = vunpack.c.l.b16 %v263
    %v361 = vunpack.c.h.b16 %v263
    %v362 = vunpack.c.l.b16 %v264
    %v363 = vunpack.c.h.b16 %v264
    %v364 = vunpack.c.l.b16 %v265
    %v365 = vunpack.c.h.b16 %v265
    %v366 = vunpack.c.l.b16 %v266
    %v367 = vunpack.c.h.b16 %v266
    %v368 = vunpack.c.l.b16 %v267
    %v369 = vunpack.c.h.b16 %v267
    %v370 = vunpack.c.l.b16 %v268
    %v371 = vunpack.c.h.b16 %v268
    %v372 = vunpack.c.l.b16 %v269
    %v373 = vunpack.c.h.b16 %v269
    %v374 = vunpack.c.l.b16 %v270
    %v375 = vunpack.c.h.b16 %v270
    %v376 = vunpack.c.l.b16 %v271
    %v377 = vunpack.c.h.b16 %v271
    %v378 = vunpack.c.l.b16 %v272
    %v379 = vunpack.c.h.b16 %v272
    %v380 = vunpack.c.l.b16 %v273
    %v381 = vunpack.c.h.b16 %v273
    %v382 = vpack.c.b16 %v320, %v318
    %v383 = vpack.c.b16 %v321, %v319
    %v384 = vpack.c.b16 %v324, %v322
    %v385 = vpack.c.b16 %v325, %v323
    %v386 = vpack.c.b16 %v328, %v326
    %v387 = vpack.c.b16 %v329, %v327
    %v388 = vpack.c.b16 %v332, %v330
    %v389 = vpack.c.b16 %v333, %v331
    %v390 = vpack.c.b16 %v336, %v334
    %v391 = vpack.c.b16 %v337, %v335
    %v392 = vpack.c.b16 %v340, %v338
    %v393 = vpack.c.b16 %v341, %v339
    %v394 = vpack.c.b16 %v344, %v342
    %v395 = vpack.c.b16 %v345, %v343
    %v396 = vpack.c.b16 %v348, %v346
    %v397 = vpack.c.b16 %v349, %v347
    %v398 = vpack.c.b16 %v352, %v350
    %v399 = vpack.c.b16 %v353, %v351
    %v400 = vpack.c.b16 %v356, %v354
    %v401 = vpack.c.b16 %v357, %v355
    %v402 = vpack.c.b16 %v360, %v358
    %v403 = vpack.c.b16 %v361, %v359
    %v404 = vpack.c.b16 %v364, %v362
    %v405 = vpack.c.b16 %v365, %v363
    %v406 = vpack.c.b16 %v368, %v366
    %v407 = vpack.c.b16 %v369, %v367
    %v408 = vpack.c.b16 %v372, %v370
    %v409 = vpack.c.b16 %v373, %v371
    %v410 = vpack.c.b16 %v376, %v374
    %v411 = vpack.c.b16 %v377, %v375
    %v412 = vpack.c.b16 %v380, %v378
    %v413 = vpack.c.b16 %v381, %v379
    %446 = vmatprep.subr.bf16.mxu0 %v383
    %447 = vmatpush1.bf16.msra.mxu0 %v382
    %448 = vmatprep.subr.bf16.mxu0 %v385
    %449 = vmatpush1.bf16.msra.mxu0 %v384
    %450 = vmatprep.subr.bf16.mxu0 %v387
    %451 = vmatpush1.bf16.msra.mxu0 %v386
    %452 = vmatprep.subr.bf16.mxu0 %v389
    %453 = vmatpush1.bf16.msra.mxu0 %v388
    %454 = vmatprep.subr.bf16.mxu0 %v391
    %455 = vmatpush1.bf16.msra.mxu0 %v390
    %456 = vmatprep.subr.bf16.mxu0 %v393
    %457 = vmatpush1.bf16.msra.mxu0 %v392
    %458 = vmatprep.subr.bf16.mxu0 %v395
    %459 = vmatpush1.bf16.msra.mxu0 %v394
    %460 = vmatprep.subr.bf16.mxu0 %v397
    %461 = vmatpush1.bf16.msra.mxu0 %v396
    %462 = vmatprep.subr.bf16.mxu0 %v399
    %463 = vmatpush1.bf16.msra.mxu0 %v398
    %464 = vmatprep.subr.bf16.mxu0 %v401
    %465 = vmatpush1.bf16.msra.mxu0 %v400
    %466 = vmatprep.subr.bf16.mxu0 %v403
    %467 = vmatpush1.bf16.msra.mxu0 %v402
    %468 = vmatprep.subr.bf16.mxu0 %v405
    %469 = vmatpush1.bf16.msra.mxu0 %v404
    %470 = vmatprep.subr.bf16.mxu0 %v407
    %471 = vmatpush1.bf16.msra.mxu0 %v406
    %472 = vmatprep.subr.bf16.mxu0 %v409
    %473 = vmatpush1.bf16.msra.mxu0 %v408
    %474 = vmatprep.subr.bf16.mxu0 %v411
    %475 = vmatpush1.bf16.msra.mxu0 %v410
    %476 = vmatprep.subr.bf16.mxu0 %v413
    %477 = vmatpush1.bf16.msra.mxu0 %v412
    %478 = vmatprep.mubr.bf16.mxu0 %v179
    %479 = vmatmul.mubr.bf16.gmra.mrb[0].mxu0 %v178
    %v480 = vpop.f32.mrb[0].mxu0
    %v481 = vadd.f32 %v279, %v480
    %v482 = vpop.f32.mrb[0].mxu0
    %v483 = vadd.f32 %v283, %v482
    %v484 = vpop.f32.mrb[0].mxu0
    %v485 = vadd.f32 %v279, %v484
    %v486 = vpop.f32.mrb[0].mxu0
    %v487 = vadd.f32 %v283, %v486
    %488 = vmatprep.mubr.bf16.mxu0 %v181
    %489 = vmatmul.mubr.bf16.gmra.mrb[0].mxu0 %v180
    %v490 = vpop.f32.mrb[0].mxu0
    %v491 = vadd.f32 %v279, %v490
    %v492 = vpop.f32.mrb[0].mxu0
    %v493 = vadd.f32 %v283, %v492
    %v494 = vpop.f32.mrb[0].mxu0
    %v495 = vadd.f32 %v279, %v494
    %v496 = vpop.f32.mrb[0].mxu0
    %v497 = vadd.f32 %v283, %v496
    %498 = vmatprep.mubr.bf16.mxu0 %v183
    %499 = vmatmul.mubr.bf16.gmra.mrb[0].mxu0 %v182
    %v500 = vpop.f32.mrb[0].mxu0
    %v501 = vadd.f32 %v279, %v500
    %v502 = vpop.f32.mrb[0].mxu0
    %v503 = vadd.f32 %v283, %v502
    %v504 = vpop.f32.mrb[0].mxu0
    %v505 = vadd.f32 %v279, %v504
    %v506 = vpop.f32.mrb[0].mxu0
    %v507 = vadd.f32 %v283, %v506
    %508 = vmatprep.mubr.bf16.mxu0 %v185
    %509 = vmatmul.mubr.bf16.gmra.mrb[0].mxu0 %v184
    %v510 = vpop.f32.mrb[0].mxu0
    %v511 = vadd.f32 %v279, %v510
    %v512 = vpop.f32.mrb[0].mxu0
    %v513 = vadd.f32 %v283, %v512
    %v514 = vpop.f32.mrb[0].mxu0
    %v515 = vadd.f32 %v279, %v514
    %v516 = vpop.f32.mrb[0].mxu0
    %v517 = vadd.f32 %v283, %v516
    %518 = vmatprep.mubr.bf16.mxu0 %v187
    %519 = vmatmul.mubr.bf16.gmra.mrb[0].mxu0 %v186
    %v520 = vpop.f32.mrb[0].mxu0
    %v521 = vadd.f32 %v279, %v520
    %v522 = vpop.f32.mrb[0].mxu0
    %v523 = vadd.f32 %v283, %v522
    %v524 = vpop.f32.mrb[0].mxu0
    %v525 = vadd.f32 %v279, %v524
    %v526 = vpop.f32.mrb[0].mxu0
    %v527 = vadd.f32 %v283, %v526
    %528 = vmatprep.mubr.bf16.mxu0 %v189
    %529 = vmatmul.mubr.bf16.gmra.mrb[0].mxu0 %v188
    %v530 = vpop.f32.mrb[0].mxu0
    %v531 = vadd.f32 %v279, %v530
    %v532 = vpop.f32.mrb[0].mxu0
    %v533 = vadd.f32 %v283, %v532
    %v534 = vpop.f32.mrb[0].mxu0
    %v535 = vadd.f32 %v279, %v534
    %v536 = vpop.f32.mrb[0].mxu0
    %v537 = vadd.f32 %v283, %v536
    %538 = vmatprep.mubr.bf16.mxu0 %v191
    %539 = vmatmul.mubr.bf16.gmra.mrb[0].mxu0 %v190
    %v540 = vpop.f32.mrb[0].mxu0
    %v541 = vadd.f32 %v279, %v540
    %v542 = vpop.f32.mrb[0].mxu0
    %v543 = vadd.f32 %v283, %v542
    %v544 = vpop.f32.mrb[0].mxu0
    %v545 = vadd.f32 %v279, %v544
    %v546 = vpop.f32.mrb[0].mxu0
    %v547 = vadd.f32 %v283, %v546
    %548 = vmatprep.mubr.bf16.mxu0 %v193
    %549 = vmatmul.mubr.bf16.gmra.mrb[0].mxu0 %v192
    %v550 = vpop.f32.mrb[0].mxu0
    %v551 = vadd.f32 %v279, %v550
    %v552 = vpop.f32.mrb[0].mxu0
    %v553 = vadd.f32 %v283, %v552
    %v554 = vpop.f32.mrb[0].mxu0
    %v555 = vadd.f32 %v279, %v554
    %v556 = vpop.f32.mrb[0].mxu0
    %v557 = vadd.f32 %v283, %v556
    %558 = vmatprep.mubr.bf16.mxu0 %v195
    %559 = vmatmul.mubr.bf16.gmra.mrb[0].mxu0 %v194
    %v560 = vpop.f32.mrb[0].mxu0
    %v561 = vadd.f32 %v279, %v560
    %v562 = vpop.f32.mrb[0].mxu0
    %v563 = vadd.f32 %v283, %v562
    %v564 = vpop.f32.mrb[0].mxu0
    %v565 = vadd.f32 %v279, %v564
    %v566 = vpop.f32.mrb[0].mxu0
    %v567 = vadd.f32 %v283, %v566
    %568 = vmatprep.mubr.bf16.mxu0 %v197
    %569 = vmatmul.mubr.bf16.gmra.mrb[0].mxu0 %v196
    %v570 = vpop.f32.mrb[0].mxu0
    %v571 = vadd.f32 %v279, %v570
    %v572 = vpop.f32.mrb[0].mxu0
    %v573 = vadd.f32 %v283, %v572
    %v574 = vpop.f32.mrb[0].mxu0
    %v575 = vadd.f32 %v279, %v574
    %v576 = vpop.f32.mrb[0].mxu0
    %v577 = vadd.f32 %v283, %v576
    %578 = vmatprep.mubr.bf16.mxu0 %v199
    %579 = vmatmul.mubr.bf16.gmra.mrb[0].mxu0 %v198
    %v580 = vpop.f32.mrb[0].mxu0
    %v581 = vadd.f32 %v279, %v580
    %v582 = vpop.f32.mrb[0].mxu0
    %v583 = vadd.f32 %v283, %v582
    %v584 = vpop.f32.mrb[0].mxu0
    %v585 = vadd.f32 %v279, %v584
    %v586 = vpop.f32.mrb[0].mxu0
    %v587 = vadd.f32 %v283, %v586
    %588 = vmatprep.mubr.bf16.mxu0 %v201
    %589 = vmatmul.mubr.bf16.gmra.mrb[0].mxu0 %v200
    %v590 = vpop.f32.mrb[0].mxu0
    %v591 = vadd.f32 %v279, %v590
    %v592 = vpop.f32.mrb[0].mxu0
    %v593 = vadd.f32 %v283, %v592
    %v594 = vpop.f32.mrb[0].mxu0
    %v595 = vadd.f32 %v279, %v594
    %v596 = vpop.f32.mrb[0].mxu0
    %v597 = vadd.f32 %v283, %v596
    %598 = vmatprep.mubr.bf16.mxu0 %v203
    %599 = vmatmul.mubr.bf16.gmra.mrb[0].mxu0 %v202
    %v600 = vpop.f32.mrb[0].mxu0
    %v601 = vadd.f32 %v279, %v600
    %v602 = vpop.f32.mrb[0].mxu0
    %v603 = vadd.f32 %v283, %v602
    %v604 = vpop.f32.mrb[0].mxu0
    %v605 = vadd.f32 %v279, %v604
    %v606 = vpop.f32.mrb[0].mxu0
    %v607 = vadd.f32 %v283, %v606
    %608 = vmatprep.mubr.bf16.mxu0 %v205
    %609 = vmatmul.mubr.bf16.gmra.mrb[0].mxu0 %v204
    %v610 = vpop.f32.mrb[0].mxu0
    %v611 = vadd.f32 %v279, %v610
    %v612 = vpop.f32.mrb[0].mxu0
    %v613 = vadd.f32 %v283, %v612
    %v614 = vpop.f32.mrb[0].mxu0
    %v615 = vadd.f32 %v279, %v614
    %v616 = vpop.f32.mrb[0].mxu0
    %v617 = vadd.f32 %v283, %v616
    %618 = vmatprep.mubr.bf16.mxu0 %v207
    %619 = vmatmul.mubr.bf16.gmra.mrb[0].mxu0 %v206
    %v620 = vpop.f32.mrb[0].mxu0
    %v621 = vadd.f32 %v279, %v620
    %v622 = vpop.f32.mrb[0].mxu0
    %v623 = vadd.f32 %v283, %v622
    %v624 = vpop.f32.mrb[0].mxu0
    %v625 = vadd.f32 %v279, %v624
    %v626 = vpop.f32.mrb[0].mxu0
    %v627 = vadd.f32 %v283, %v626
    %628 = vmatprep.mubr.bf16.mxu0 %v209
    %629 = vmatmul.mubr.bf16.gmra.mrb[0].mxu0 %v208
    %v630 = vpop.f32.mrb[0].mxu0
    %v631 = vadd.f32 %v279, %v630
    %v632 = vpop.f32.mrb[0].mxu0
    %v633 = vadd.f32 %v283, %v632
    %v634 = vpop.f32.mrb[0].mxu0
    %v635 = vadd.f32 %v279, %v634
    %v636 = vpop.f32.mrb[0].mxu0
    %v637 = vadd.f32 %v283, %v636
    %638 = vmatprep.mubr.bf16.mxu0 %v211
    %639 = vmatmul.mubr.bf16.gmra.mrb[0].mxu0 %v210
    %v640 = vpop.f32.mrb[0].mxu0
    %v641 = vadd.f32 %v279, %v640
    %v642 = vpop.f32.mrb[0].mxu0
    %v643 = vadd.f32 %v283, %v642
    %v644 = vpop.f32.mrb[0].mxu0
    %v645 = vadd.f32 %v279, %v644
    %v646 = vpop.f32.mrb[0].mxu0
    %v647 = vadd.f32 %v283, %v646
    %648 = vmatprep.mubr.bf16.mxu0 %v213
    %649 = vmatmul.mubr.bf16.gmra.mrb[0].mxu0 %v212
    %v650 = vpop.f32.mrb[0].mxu0
    %v651 = vadd.f32 %v279, %v650
    %v652 = vpop.f32.mrb[0].mxu0
    %v653 = vadd.f32 %v283, %v652
    %v654 = vpop.f32.mrb[0].mxu0
    %v655 = vadd.f32 %v279, %v654
    %v656 = vpop.f32.mrb[0].mxu0
    %v657 = vadd.f32 %v283, %v656
    %658 = vmatprep.mubr.bf16.mxu0 %v215
    %659 = vmatmul.mubr.bf16.gmra.mrb[0].mxu0 %v214
    %v660 = vpop.f32.mrb[0].mxu0
    %v661 = vadd.f32 %v279, %v660
    %v662 = vpop.f32.mrb[0].mxu0
    %v663 = vadd.f32 %v283, %v662
    %v664 = vpop.f32.mrb[0].mxu0
    %v665 = vadd.f32 %v279, %v664
    %v666 = vpop.f32.mrb[0].mxu0
    %v667 = vadd.f32 %v283, %v666
    %668 = vmatprep.mubr.bf16.mxu0 %v217
    %669 = vmatmul.mubr.bf16.gmra.mrb[0].mxu0 %v216
    %v670 = vpop.f32.mrb[0].mxu0
    %v671 = vadd.f32 %v279, %v670
    %v672 = vpop.f32.mrb[0].mxu0
    %v673 = vadd.f32 %v283, %v672
    %v674 = vpop.f32.mrb[0].mxu0
    %v675 = vadd.f32 %v279, %v674
    %v676 = vpop.f32.mrb[0].mxu0
    %v677 = vadd.f32 %v283, %v676
    %678 = vmatprep.mubr.bf16.mxu0 %v219
    %679 = vmatmul.mubr.bf16.gmra.mrb[0].mxu0 %v218
    %v680 = vpop.f32.mrb[0].mxu0
    %v681 = vadd.f32 %v279, %v680
    %v682 = vpop.f32.mrb[0].mxu0
    %v683 = vadd.f32 %v283, %v682
    %v684 = vpop.f32.mrb[0].mxu0
    %v685 = vadd.f32 %v279, %v684
    %v686 = vpop.f32.mrb[0].mxu0
    %v687 = vadd.f32 %v283, %v686
    %688 = vmatprep.mubr.bf16.mxu0 %v221
    %689 = vmatmul.mubr.bf16.gmra.mrb[0].mxu0 %v220
    %v690 = vpop.f32.mrb[0].mxu0
    %v691 = vadd.f32 %v279, %v690
    %v692 = vpop.f32.mrb[0].mxu0
    %v693 = vadd.f32 %v283, %v692
    %v694 = vpop.f32.mrb[0].mxu0
    %v695 = vadd.f32 %v279, %v694
    %v696 = vpop.f32.mrb[0].mxu0
    %v697 = vadd.f32 %v283, %v696
    %698 = vmatprep.mubr.bf16.mxu0 %v223
    %699 = vmatmul.mubr.bf16.gmra.mrb[0].mxu0 %v222
    %v700 = vpop.f32.mrb[0].mxu0
    %v701 = vadd.f32 %v279, %v700
    %v702 = vpop.f32.mrb[0].mxu0
    %v703 = vadd.f32 %v283, %v702
    %v704 = vpop.f32.mrb[0].mxu0
    %v705 = vadd.f32 %v279, %v704
    %v706 = vpop.f32.mrb[0].mxu0
    %v707 = vadd.f32 %v283, %v706
    %708 = vmatprep.mubr.bf16.mxu0 %v225
    %709 = vmatmul.mubr.bf16.gmra.mrb[0].mxu0 %v224
    %v710 = vpop.f32.mrb[0].mxu0
    %v711 = vadd.f32 %v279, %v710
    %v712 = vpop.f32.mrb[0].mxu0
    %v713 = vadd.f32 %v283, %v712
    %v714 = vpop.f32.mrb[0].mxu0
    %v715 = vadd.f32 %v279, %v714
    %v716 = vpop.f32.mrb[0].mxu0
    %v717 = vadd.f32 %v283, %v716
    %718 = vmatprep.mubr.bf16.mxu0 %v227
    %719 = vmatmul.mubr.bf16.gmra.mrb[0].mxu0 %v226
    %v720 = vpop.f32.mrb[0].mxu0
    %v721 = vadd.f32 %v279, %v720
    %v722 = vpop.f32.mrb[0].mxu0
    %v723 = vadd.f32 %v283, %v722
    %v724 = vpop.f32.mrb[0].mxu0
    %v725 = vadd.f32 %v279, %v724
    %v726 = vpop.f32.mrb[0].mxu0
    %v727 = vadd.f32 %v283, %v726
    %728 = vmatprep.mubr.bf16.mxu0 %v229
    %729 = vmatmul.mubr.bf16.gmra.mrb[0].mxu0 %v228
    %v730 = vpop.f32.mrb[0].mxu0
    %v731 = vadd.f32 %v279, %v730
    %v732 = vpop.f32.mrb[0].mxu0
    %v733 = vadd.f32 %v283, %v732
    %v734 = vpop.f32.mrb[0].mxu0
    %v735 = vadd.f32 %v279, %v734
    %v736 = vpop.f32.mrb[0].mxu0
    %v737 = vadd.f32 %v283, %v736
    %738 = vmatprep.mubr.bf16.mxu0 %v231
    %739 = vmatmul.mubr.bf16.gmra.mrb[0].mxu0 %v230
    %v740 = vpop.f32.mrb[0].mxu0
    %v741 = vadd.f32 %v279, %v740
    %v742 = vpop.f32.mrb[0].mxu0
    %v743 = vadd.f32 %v283, %v742
    %v744 = vpop.f32.mrb[0].mxu0
    %v745 = vadd.f32 %v279, %v744
    %v746 = vpop.f32.mrb[0].mxu0
    %v747 = vadd.f32 %v283, %v746
    %748 = vmatprep.mubr.bf16.mxu0 %v233
    %749 = vmatmul.mubr.bf16.gmra.mrb[0].mxu0 %v232
    %v750 = vpop.f32.mrb[0].mxu0
    %v751 = vadd.f32 %v279, %v750
    %v752 = vpop.f32.mrb[0].mxu0
    %v753 = vadd.f32 %v283, %v752
    %v754 = vpop.f32.mrb[0].mxu0
    %v755 = vadd.f32 %v279, %v754
    %v756 = vpop.f32.mrb[0].mxu0
    %v757 = vadd.f32 %v283, %v756
    %758 = vmatprep.mubr.bf16.mxu0 %v235
    %759 = vmatmul.mubr.bf16.gmra.mrb[0].mxu0 %v234
    %v760 = vpop.f32.mrb[0].mxu0
    %v761 = vadd.f32 %v279, %v760
    %v762 = vpop.f32.mrb[0].mxu0
    %v763 = vadd.f32 %v283, %v762
    %v764 = vpop.f32.mrb[0].mxu0
    %v765 = vadd.f32 %v279, %v764
    %v766 = vpop.f32.mrb[0].mxu0
    %v767 = vadd.f32 %v283, %v766
    %768 = vmatprep.mubr.bf16.mxu0 %v237
    %769 = vmatmul.mubr.bf16.gmra.mrb[0].mxu0 %v236
    %v770 = vpop.f32.mrb[0].mxu0
    %v771 = vadd.f32 %v279, %v770
    %v772 = vpop.f32.mrb[0].mxu0
    %v773 = vadd.f32 %v283, %v772
    %v774 = vpop.f32.mrb[0].mxu0
    %v775 = vadd.f32 %v279, %v774
    %v776 = vpop.f32.mrb[0].mxu0
    %v777 = vadd.f32 %v283, %v776
    %778 = vmatprep.mubr.bf16.mxu0 %v239
    %779 = vmatmul.mubr.bf16.gmra.mrb[0].mxu0 %v238
    %v780 = vpop.f32.mrb[0].mxu0
    %v781 = vadd.f32 %v279, %v780
    %v782 = vpop.f32.mrb[0].mxu0
    %v783 = vadd.f32 %v283, %v782
    %v784 = vpop.f32.mrb[0].mxu0
    %v785 = vadd.f32 %v279, %v784
    %v786 = vpop.f32.mrb[0].mxu0
    %v787 = vadd.f32 %v283, %v786
    %788 = vmatprep.mubr.bf16.mxu0 %v241
    %789 = vmatmul.mubr.bf16.gmra.mrb[0].mxu0 %v240
    %v790 = vpop.f32.mrb[0].mxu0
    %v791 = vadd.f32 %v279, %v790
    %v792 = vpop.f32.mrb[0].mxu0
    %v793 = vadd.f32 %v283, %v792
    %v794 = vpop.f32.mrb[0].mxu0
    %v795 = vadd.f32 %v279, %v794
    %v796 = vpop.f32.mrb[0].mxu0
    %v797 = vadd.f32 %v283, %v796
    %798 = vdwg.mxu0
    %v799 = vtanh.pop %v481
    %v800 = vtanh.pop %v485
    %v801 = vtanh.pop %v491
    %v802 = vtanh.pop %v495
    %v803 = vtanh.pop %v501
    %v804 = vtanh.pop %v505
    %v805 = vtanh.pop %v511
    %v806 = vtanh.pop %v515
    %v807 = vtanh.pop %v521
    %v808 = vtanh.pop %v525
    %v809 = vtanh.pop %v531
    %v810 = vtanh.pop %v535
    %v811 = vtanh.pop %v541
    %v812 = vtanh.pop %v545
    %v813 = vtanh.pop %v551
    %v814 = vtanh.pop %v555
    %v815 = vtanh.pop %v561
    %v816 = vtanh.pop %v565
    %v817 = vtanh.pop %v571
    %v818 = vtanh.pop %v575
    %v819 = vtanh.pop %v581
    %v820 = vtanh.pop %v585
    %v821 = vtanh.pop %v591
    %v822 = vtanh.pop %v595
    %v823 = vtanh.pop %v601
    %v824 = vtanh.pop %v605
    %v825 = vtanh.pop %v611
    %v826 = vtanh.pop %v615
    %v827 = vtanh.pop %v621
    %v828 = vtanh.pop %v625
    %v829 = vtanh.pop %v631
    %v830 = vtanh.pop %v635
    %v831 = vtanh.pop %v641
    %v832 = vtanh.pop %v645
    %v833 = vtanh.pop %v651
    %v834 = vtanh.pop %v655
    %v835 = vtanh.pop %v661
    %v836 = vtanh.pop %v665
    %v837 = vtanh.pop %v671
    %v838 = vtanh.pop %v675
    %v839 = vtanh.pop %v681
    %v840 = vtanh.pop %v685
    %v841 = vtanh.pop %v691
    %v842 = vtanh.pop %v695
    %v843 = vtanh.pop %v701
    %v844 = vtanh.pop %v705
    %v845 = vtanh.pop %v711
    %v846 = vtanh.pop %v715
    %v847 = vtanh.pop %v721
    %v848 = vtanh.pop %v725
    %v849 = vtanh.pop %v731
    %v850 = vtanh.pop %v735
    %v851 = vtanh.pop %v741
    %v852 = vtanh.pop %v745
    %v853 = vtanh.pop %v751
    %v854 = vtanh.pop %v755
    %v855 = vtanh.pop %v761
    %v856 = vtanh.pop %v765
    %v857 = vtanh.pop %v771
    %v858 = vtanh.pop %v775
    %v859 = vtanh.pop %v781
    %v860 = vtanh.pop %v785
    %v861 = vtanh.pop %v791
    %v862 = vtanh.pop %v795
    %v863 = vxor.u32 %v483, 2147483648
    %v864 = vxor.u32 %v487, 2147483648
    %v865 = vxor.u32 %v493, 2147483648
    %v866 = vxor.u32 %v497, 2147483648
    %v867 = vxor.u32 %v503, 2147483648
    %v868 = vxor.u32 %v507, 2147483648
    %v869 = vxor.u32 %v513, 2147483648
    %v870 = vxor.u32 %v517, 2147483648
    %v871 = vxor.u32 %v523, 2147483648
    %v872 = vxor.u32 %v527, 2147483648
    %v873 = vxor.u32 %v533, 2147483648
    %v874 = vxor.u32 %v537, 2147483648
    %v875 = vxor.u32 %v543, 2147483648
    %v876 = vxor.u32 %v547, 2147483648
    %v877 = vxor.u32 %v553, 2147483648
    %v878 = vxor.u32 %v557, 2147483648
    %v879 = vxor.u32 %v563, 2147483648
    %v880 = vxor.u32 %v567, 2147483648
    %v881 = vxor.u32 %v573, 2147483648
    %v882 = vxor.u32 %v577, 2147483648
    %v883 = vxor.u32 %v583, 2147483648
    %v884 = vxor.u32 %v587, 2147483648
    %v885 = vxor.u32 %v593, 2147483648
    %v886 = vxor.u32 %v597, 2147483648
    %v887 = vxor.u32 %v603, 2147483648
    %v888 = vxor.u32 %v607, 2147483648
    %v889 = vxor.u32 %v613, 2147483648
    %v890 = vxor.u32 %v617, 2147483648
    %v891 = vxor.u32 %v623, 2147483648
    %v892 = vxor.u32 %v627, 2147483648
    %v893 = vxor.u32 %v633, 2147483648
    %v894 = vxor.u32 %v637, 2147483648
    %v895 = vxor.u32 %v643, 2147483648
    %v896 = vxor.u32 %v647, 2147483648
    %v897 = vxor.u32 %v653, 2147483648
    %v898 = vxor.u32 %v657, 2147483648
    %v899 = vxor.u32 %v663, 2147483648
    %v900 = vxor.u32 %v667, 2147483648
    %v901 = vxor.u32 %v673, 2147483648
    %v902 = vxor.u32 %v677, 2147483648
    %v903 = vxor.u32 %v683, 2147483648
    %v904 = vxor.u32 %v687, 2147483648
    %v905 = vxor.u32 %v693, 2147483648
    %v906 = vxor.u32 %v697, 2147483648
    %v907 = vxor.u32 %v703, 2147483648
    %v908 = vxor.u32 %v707, 2147483648
    %v909 = vxor.u32 %v713, 2147483648
    %v910 = vxor.u32 %v717, 2147483648
    %v911 = vxor.u32 %v723, 2147483648
    %v912 = vxor.u32 %v727, 2147483648
    %v913 = vxor.u32 %v733, 2147483648
    %v914 = vxor.u32 %v737, 2147483648
    %v915 = vxor.u32 %v743, 2147483648
    %v916 = vxor.u32 %v747, 2147483648
    %v917 = vxor.u32 %v753, 2147483648
    %v918 = vxor.u32 %v757, 2147483648
    %v919 = vxor.u32 %v763, 2147483648
    %v920 = vxor.u32 %v767, 2147483648
    %v921 = vxor.u32 %v773, 2147483648
    %v922 = vxor.u32 %v777, 2147483648
    %v923 = vxor.u32 %v783, 2147483648
    %v924 = vxor.u32 %v787, 2147483648
    %v925 = vxor.u32 %v793, 2147483648
    %v926 = vxor.u32 %v797, 2147483648
    %v927 = vmul.f32 %v863, 1.442695
    %v928 = vpow.pop %v927
    %v929 = vmul.f32 %v864, 1.442695
    %v930 = vpow.pop %v929
    %v931 = vmul.f32 %v865, 1.442695
    %v932 = vpow.pop %v931
    %v933 = vmul.f32 %v866, 1.442695
    %v934 = vpow.pop %v933
    %v935 = vmul.f32 %v867, 1.442695
    %v936 = vpow.pop %v935
    %v937 = vmul.f32 %v868, 1.442695
    %v938 = vpow.pop %v937
    %v939 = vmul.f32 %v869, 1.442695
    %v940 = vpow.pop %v939
    %v941 = vmul.f32 %v870, 1.442695
    %v942 = vpow.pop %v941
    %v943 = vmul.f32 %v871, 1.442695
    %v944 = vpow.pop %v943
    %v945 = vmul.f32 %v872, 1.442695
    %v946 = vpow.pop %v945
    %v947 = vmul.f32 %v873, 1.442695
    %v948 = vpow.pop %v947
    %v949 = vmul.f32 %v874, 1.442695
    %v950 = vpow.pop %v949
    %v951 = vmul.f32 %v875, 1.442695
    %v952 = vpow.pop %v951
    %v953 = vmul.f32 %v876, 1.442695
    %v954 = vpow.pop %v953
    %v955 = vmul.f32 %v877, 1.442695
    %v956 = vpow.pop %v955
    %v957 = vmul.f32 %v878, 1.442695
    %v958 = vpow.pop %v957
    %v959 = vmul.f32 %v879, 1.442695
    %v960 = vpow.pop %v959
    %v961 = vmul.f32 %v880, 1.442695
    %v962 = vpow.pop %v961
    %v963 = vmul.f32 %v881, 1.442695
    %v964 = vpow.pop %v963
    %v965 = vmul.f32 %v882, 1.442695
    %v966 = vpow.pop %v965
    %v967 = vmul.f32 %v883, 1.442695
    %v968 = vpow.pop %v967
    %v969 = vmul.f32 %v884, 1.442695
    %v970 = vpow.pop %v969
    %v971 = vmul.f32 %v885, 1.442695
    %v972 = vpow.pop %v971
    %v973 = vmul.f32 %v886, 1.442695
    %v974 = vpow.pop %v973
    %v975 = vmul.f32 %v887, 1.442695
    %v976 = vpow.pop %v975
    %v977 = vmul.f32 %v888, 1.442695
    %v978 = vpow.pop %v977
    %v979 = vmul.f32 %v889, 1.442695
    %v980 = vpow.pop %v979
    %v981 = vmul.f32 %v890, 1.442695
    %v982 = vpow.pop %v981
    %v983 = vmul.f32 %v891, 1.442695
    %v984 = vpow.pop %v983
    %v985 = vmul.f32 %v892, 1.442695
    %v986 = vpow.pop %v985
    %v987 = vmul.f32 %v893, 1.442695
    %v988 = vpow.pop %v987
    %v989 = vmul.f32 %v894, 1.442695
    %v990 = vpow.pop %v989
    %v991 = vmul.f32 %v895, 1.442695
    %v992 = vpow.pop %v991
    %v993 = vmul.f32 %v896, 1.442695
    %v994 = vpow.pop %v993
    %v995 = vmul.f32 %v897, 1.442695
    %v996 = vpow.pop %v995
    %v997 = vmul.f32 %v898, 1.442695
    %v998 = vpow.pop %v997
    %v999 = vmul.f32 %v899, 1.442695
    %v1000 = vpow.pop %v999
    %v1001 = vmul.f32 %v900, 1.442695
    %v1002 = vpow.pop %v1001
    %v1003 = vmul.f32 %v901, 1.442695
    %v1004 = vpow.pop %v1003
    %v1005 = vmul.f32 %v902, 1.442695
    %v1006 = vpow.pop %v1005
    %v1007 = vmul.f32 %v903, 1.442695
    %v1008 = vpow.pop %v1007
    %v1009 = vmul.f32 %v904, 1.442695
    %v1010 = vpow.pop %v1009
    %v1011 = vmul.f32 %v905, 1.442695
    %v1012 = vpow.pop %v1011
    %v1013 = vmul.f32 %v906, 1.442695
    %v1014 = vpow.pop %v1013
    %v1015 = vmul.f32 %v907, 1.442695
    %v1016 = vpow.pop %v1015
    %v1017 = vmul.f32 %v908, 1.442695
    %v1018 = vpow.pop %v1017
    %v1019 = vmul.f32 %v909, 1.442695
    %v1020 = vpow.pop %v1019
    %v1021 = vmul.f32 %v910, 1.442695
    %v1022 = vpow.pop %v1021
    %v1023 = vmul.f32 %v911, 1.442695
    %v1024 = vpow.pop %v1023
    %v1025 = vmul.f32 %v912, 1.442695
    %v1026 = vpow.pop %v1025
    %v1027 = vmul.f32 %v913, 1.442695
    %v1028 = vpow.pop %v1027
    %v1029 = vmul.f32 %v914, 1.442695
    %v1030 = vpow.pop %v1029
    %v1031 = vmul.f32 %v915, 1.442695
    %v1032 = vpow.pop %v1031
    %v1033 = vmul.f32 %v916, 1.442695
    %v1034 = vpow.pop %v1033
    %v1035 = vmul.f32 %v917, 1.442695
    %v1036 = vpow.pop %v1035
    %v1037 = vmul.f32 %v918, 1.442695
    %v1038 = vpow.pop %v1037
    %v1039 = vmul.f32 %v919, 1.442695
    %v1040 = vpow.pop %v1039
    %v1041 = vmul.f32 %v920, 1.442695
    %v1042 = vpow.pop %v1041
    %v1043 = vmul.f32 %v921, 1.442695
    %v1044 = vpow.pop %v1043
    %v1045 = vmul.f32 %v922, 1.442695
    %v1046 = vpow.pop %v1045
    %v1047 = vmul.f32 %v923, 1.442695
    %v1048 = vpow.pop %v1047
    %v1049 = vmul.f32 %v924, 1.442695
    %v1050 = vpow.pop %v1049
    %v1051 = vmul.f32 %v925, 1.442695
    %v1052 = vpow.pop %v1051
    %v1053 = vmul.f32 %v926, 1.442695
    %v1054 = vpow.pop %v1053
    %v1055 = vadd.f32 %v928, 1.0
    %v1056 = vadd.f32 %v930, 1.0
    %v1057 = vadd.f32 %v932, 1.0
    %v1058 = vadd.f32 %v934, 1.0
    %v1059 = vadd.f32 %v936, 1.0
    %v1060 = vadd.f32 %v938, 1.0
    %v1061 = vadd.f32 %v940, 1.0
    %v1062 = vadd.f32 %v942, 1.0
    %v1063 = vadd.f32 %v944, 1.0
    %v1064 = vadd.f32 %v946, 1.0
    %v1065 = vadd.f32 %v948, 1.0
    %v1066 = vadd.f32 %v950, 1.0
    %v1067 = vadd.f32 %v952, 1.0
    %v1068 = vadd.f32 %v954, 1.0
    %v1069 = vadd.f32 %v956, 1.0
    %v1070 = vadd.f32 %v958, 1.0
    %v1071 = vadd.f32 %v960, 1.0
    %v1072 = vadd.f32 %v962, 1.0
    %v1073 = vadd.f32 %v964, 1.0
    %v1074 = vadd.f32 %v966, 1.0
    %v1075 = vadd.f32 %v968, 1.0
    %v1076 = vadd.f32 %v970, 1.0
    %v1077 = vadd.f32 %v972, 1.0
    %v1078 = vadd.f32 %v974, 1.0
    %v1079 = vadd.f32 %v976, 1.0
    %v1080 = vadd.f32 %v978, 1.0
    %v1081 = vadd.f32 %v980, 1.0
    %v1082 = vadd.f32 %v982, 1.0
    %v1083 = vadd.f32 %v984, 1.0
    %v1084 = vadd.f32 %v986, 1.0
    %v1085 = vadd.f32 %v988, 1.0
    %v1086 = vadd.f32 %v990, 1.0
    %v1087 = vadd.f32 %v992, 1.0
    %v1088 = vadd.f32 %v994, 1.0
    %v1089 = vadd.f32 %v996, 1.0
    %v1090 = vadd.f32 %v998, 1.0
    %v1091 = vadd.f32 %v1000, 1.0
    %v1092 = vadd.f32 %v1002, 1.0
    %v1093 = vadd.f32 %v1004, 1.0
    %v1094 = vadd.f32 %v1006, 1.0
    %v1095 = vadd.f32 %v1008, 1.0
    %v1096 = vadd.f32 %v1010, 1.0
    %v1097 = vadd.f32 %v1012, 1.0
    %v1098 = vadd.f32 %v1014, 1.0
    %v1099 = vadd.f32 %v1016, 1.0
    %v1100 = vadd.f32 %v1018, 1.0
    %v1101 = vadd.f32 %v1020, 1.0
    %v1102 = vadd.f32 %v1022, 1.0
    %v1103 = vadd.f32 %v1024, 1.0
    %v1104 = vadd.f32 %v1026, 1.0
    %v1105 = vadd.f32 %v1028, 1.0
    %v1106 = vadd.f32 %v1030, 1.0
    %v1107 = vadd.f32 %v1032, 1.0
    %v1108 = vadd.f32 %v1034, 1.0
    %v1109 = vadd.f32 %v1036, 1.0
    %v1110 = vadd.f32 %v1038, 1.0
    %v1111 = vadd.f32 %v1040, 1.0
    %v1112 = vadd.f32 %v1042, 1.0
    %v1113 = vadd.f32 %v1044, 1.0
    %v1114 = vadd.f32 %v1046, 1.0
    %v1115 = vadd.f32 %v1048, 1.0
    %v1116 = vadd.f32 %v1050, 1.0
    %v1117 = vadd.f32 %v1052, 1.0
    %v1118 = vadd.f32 %v1054, 1.0
    %v1119 = vrcp.pop %v1055
    %v1120 = vmul.f32 1.0, %v1119
    %v1121 = vrcp.pop %v1056
    %v1122 = vmul.f32 1.0, %v1121
    %v1123 = vrcp.pop %v1057
    %v1124 = vmul.f32 1.0, %v1123
    %v1125 = vrcp.pop %v1058
    %v1126 = vmul.f32 1.0, %v1125
    %v1127 = vrcp.pop %v1059
    %v1128 = vmul.f32 1.0, %v1127
    %v1129 = vrcp.pop %v1060
    %v1130 = vmul.f32 1.0, %v1129
    %v1131 = vrcp.pop %v1061
    %v1132 = vmul.f32 1.0, %v1131
    %v1133 = vrcp.pop %v1062
    %v1134 = vmul.f32 1.0, %v1133
    %v1135 = vrcp.pop %v1063
    %v1136 = vmul.f32 1.0, %v1135
    %v1137 = vrcp.pop %v1064
    %v1138 = vmul.f32 1.0, %v1137
    %v1139 = vrcp.pop %v1065
    %v1140 = vmul.f32 1.0, %v1139
    %v1141 = vrcp.pop %v1066
    %v1142 = vmul.f32 1.0, %v1141
    %v1143 = vrcp.pop %v1067
    %v1144 = vmul.f32 1.0, %v1143
    %v1145 = vrcp.pop %v1068
    %v1146 = vmul.f32 1.0, %v1145
    %v1147 = vrcp.pop %v1069
    %v1148 = vmul.f32 1.0, %v1147
    %v1149 = vrcp.pop %v1070
    %v1150 = vmul.f32 1.0, %v1149
    %v1151 = vrcp.pop %v1071
    %v1152 = vmul.f32 1.0, %v1151
    %v1153 = vrcp.pop %v1072
    %v1154 = vmul.f32 1.0, %v1153
    %v1155 = vrcp.pop %v1073
    %v1156 = vmul.f32 1.0, %v1155
    %v1157 = vrcp.pop %v1074
    %v1158 = vmul.f32 1.0, %v1157
    %v1159 = vrcp.pop %v1075
    %v1160 = vmul.f32 1.0, %v1159
    %v1161 = vrcp.pop %v1076
    %v1162 = vmul.f32 1.0, %v1161
    %v1163 = vrcp.pop %v1077
    %v1164 = vmul.f32 1.0, %v1163
    %v1165 = vrcp.pop %v1078
    %v1166 = vmul.f32 1.0, %v1165
    %v1167 = vrcp.pop %v1079
    %v1168 = vmul.f32 1.0, %v1167
    %v1169 = vrcp.pop %v1080
    %v1170 = vmul.f32 1.0, %v1169
    %v1171 = vrcp.pop %v1081
    %v1172 = vmul.f32 1.0, %v1171
    %v1173 = vrcp.pop %v1082
    %v1174 = vmul.f32 1.0, %v1173
    %v1175 = vrcp.pop %v1083
    %v1176 = vmul.f32 1.0, %v1175
    %v1177 = vrcp.pop %v1084
    %v1178 = vmul.f32 1.0, %v1177
    %v1179 = vrcp.pop %v1085
    %v1180 = vmul.f32 1.0, %v1179
    %v1181 = vrcp.pop %v1086
    %v1182 = vmul.f32 1.0, %v1181
    %v1183 = vrcp.pop %v1087
    %v1184 = vmul.f32 1.0, %v1183
    %v1185 = vrcp.pop %v1088
    %v1186 = vmul.f32 1.0, %v1185
    %v1187 = vrcp.pop %v1089
    %v1188 = vmul.f32 1.0, %v1187
    %v1189 = vrcp.pop %v1090
    %v1190 = vmul.f32 1.0, %v1189
    %v1191 = vrcp.pop %v1091
    %v1192 = vmul.f32 1.0, %v1191
    %v1193 = vrcp.pop %v1092
    %v1194 = vmul.f32 1.0, %v1193
    %v1195 = vrcp.pop %v1093
    %v1196 = vmul.f32 1.0, %v1195
    %v1197 = vrcp.pop %v1094
    %v1198 = vmul.f32 1.0, %v1197
    %v1199 = vrcp.pop %v1095
    %v1200 = vmul.f32 1.0, %v1199
    %v1201 = vrcp.pop %v1096
    %v1202 = vmul.f32 1.0, %v1201
    %v1203 = vrcp.pop %v1097
    %v1204 = vmul.f32 1.0, %v1203
    %v1205 = vrcp.pop %v1098
    %v1206 = vmul.f32 1.0, %v1205
    %v1207 = vrcp.pop %v1099
    %v1208 = vmul.f32 1.0, %v1207
    %v1209 = vrcp.pop %v1100
    %v1210 = vmul.f32 1.0, %v1209
    %v1211 = vrcp.pop %v1101
    %v1212 = vmul.f32 1.0, %v1211
    %v1213 = vrcp.pop %v1102
    %v1214 = vmul.f32 1.0, %v1213
    %v1215 = vrcp.pop %v1103
    %v1216 = vmul.f32 1.0, %v1215
    %v1217 = vrcp.pop %v1104
    %v1218 = vmul.f32 1.0, %v1217
    %v1219 = vrcp.pop %v1105
    %v1220 = vmul.f32 1.0, %v1219
    %v1221 = vrcp.pop %v1106
    %v1222 = vmul.f32 1.0, %v1221
    %v1223 = vrcp.pop %v1107
    %v1224 = vmul.f32 1.0, %v1223
    %v1225 = vrcp.pop %v1108
    %v1226 = vmul.f32 1.0, %v1225
    %v1227 = vrcp.pop %v1109
    %v1228 = vmul.f32 1.0, %v1227
    %v1229 = vrcp.pop %v1110
    %v1230 = vmul.f32 1.0, %v1229
    %v1231 = vrcp.pop %v1111
    %v1232 = vmul.f32 1.0, %v1231
    %v1233 = vrcp.pop %v1112
    %v1234 = vmul.f32 1.0, %v1233
    %v1235 = vrcp.pop %v1113
    %v1236 = vmul.f32 1.0, %v1235
    %v1237 = vrcp.pop %v1114
    %v1238 = vmul.f32 1.0, %v1237
    %v1239 = vrcp.pop %v1115
    %v1240 = vmul.f32 1.0, %v1239
    %v1241 = vrcp.pop %v1116
    %v1242 = vmul.f32 1.0, %v1241
    %v1243 = vrcp.pop %v1117
    %v1244 = vmul.f32 1.0, %v1243
    %v1245 = vrcp.pop %v1118
    %v1246 = vmul.f32 1.0, %v1245
    %v1247 = vmul.f32 %v799, %v1120
    %v1248 = vmul.f32 %v800, %v1122
    %v1249 = vmul.f32 %v801, %v1124
    %v1250 = vmul.f32 %v802, %v1126
    %v1251 = vmul.f32 %v803, %v1128
    %v1252 = vmul.f32 %v804, %v1130
    %v1253 = vmul.f32 %v805, %v1132
    %v1254 = vmul.f32 %v806, %v1134
    %v1255 = vmul.f32 %v807, %v1136
    %v1256 = vmul.f32 %v808, %v1138
    %v1257 = vmul.f32 %v809, %v1140
    %v1258 = vmul.f32 %v810, %v1142
    %v1259 = vmul.f32 %v811, %v1144
    %v1260 = vmul.f32 %v812, %v1146
    %v1261 = vmul.f32 %v813, %v1148
    %v1262 = vmul.f32 %v814, %v1150
    %v1263 = vmul.f32 %v815, %v1152
    %v1264 = vmul.f32 %v816, %v1154
    %v1265 = vmul.f32 %v817, %v1156
    %v1266 = vmul.f32 %v818, %v1158
    %v1267 = vmul.f32 %v819, %v1160
    %v1268 = vmul.f32 %v820, %v1162
    %v1269 = vmul.f32 %v821, %v1164
    %v1270 = vmul.f32 %v822, %v1166
    %v1271 = vmul.f32 %v823, %v1168
    %v1272 = vmul.f32 %v824, %v1170
    %v1273 = vmul.f32 %v825, %v1172
    %v1274 = vmul.f32 %v826, %v1174
    %v1275 = vmul.f32 %v827, %v1176
    %v1276 = vmul.f32 %v828, %v1178
    %v1277 = vmul.f32 %v829, %v1180
    %v1278 = vmul.f32 %v830, %v1182
    %v1279 = vmul.f32 %v831, %v1184
    %v1280 = vmul.f32 %v832, %v1186
    %v1281 = vmul.f32 %v833, %v1188
    %v1282 = vmul.f32 %v834, %v1190
    %v1283 = vmul.f32 %v835, %v1192
    %v1284 = vmul.f32 %v836, %v1194
    %v1285 = vmul.f32 %v837, %v1196
    %v1286 = vmul.f32 %v838, %v1198
    %v1287 = vmul.f32 %v839, %v1200
    %v1288 = vmul.f32 %v840, %v1202
    %v1289 = vmul.f32 %v841, %v1204
    %v1290 = vmul.f32 %v842, %v1206
    %v1291 = vmul.f32 %v843, %v1208
    %v1292 = vmul.f32 %v844, %v1210
    %v1293 = vmul.f32 %v845, %v1212
    %v1294 = vmul.f32 %v846, %v1214
    %v1295 = vmul.f32 %v847, %v1216
    %v1296 = vmul.f32 %v848, %v1218
    %v1297 = vmul.f32 %v849, %v1220
    %v1298 = vmul.f32 %v850, %v1222
    %v1299 = vmul.f32 %v851, %v1224
    %v1300 = vmul.f32 %v852, %v1226
    %v1301 = vmul.f32 %v853, %v1228
    %v1302 = vmul.f32 %v854, %v1230
    %v1303 = vmul.f32 %v855, %v1232
    %v1304 = vmul.f32 %v856, %v1234
    %v1305 = vmul.f32 %v857, %v1236
    %v1306 = vmul.f32 %v858, %v1238
    %v1307 = vmul.f32 %v859, %v1240
    %v1308 = vmul.f32 %v860, %v1242
    %v1309 = vmul.f32 %v861, %v1244
    %v1310 = vmul.f32 %v862, %v1246
    %v1311 = vld [vmem:[%s3] sm:$0x1]
    %v1313 = vlaneseq
    %v1314 = vshrl.u32 %v1313, 7
    %v1315 = vsub.s32 0, %v1314
    %v1316 = vrot.slane %v1311, %v1315
    %v1318 = vmul.f32 %v1247, %v1316
    %v1319 = vmul.f32 %v1248, %v1316
    %v1320 = vmul.f32 %v1249, %v1316
    %v1321 = vmul.f32 %v1250, %v1316
    %v1322 = vmul.f32 %v1251, %v1316
    %v1323 = vmul.f32 %v1252, %v1316
    %v1324 = vmul.f32 %v1253, %v1316
    %v1325 = vmul.f32 %v1254, %v1316
    %v1326 = vmul.f32 %v1255, %v1316
    %v1327 = vmul.f32 %v1256, %v1316
    %v1328 = vmul.f32 %v1257, %v1316
    %v1329 = vmul.f32 %v1258, %v1316
    %v1330 = vmul.f32 %v1259, %v1316
    %v1331 = vmul.f32 %v1260, %v1316
    %v1332 = vmul.f32 %v1261, %v1316
    %v1333 = vmul.f32 %v1262, %v1316
    %v1334 = vmul.f32 %v1263, %v1316
    %v1335 = vmul.f32 %v1264, %v1316
    %v1336 = vmul.f32 %v1265, %v1316
    %v1337 = vmul.f32 %v1266, %v1316
    %v1338 = vmul.f32 %v1267, %v1316
    %v1339 = vmul.f32 %v1268, %v1316
    %v1340 = vmul.f32 %v1269, %v1316
    %v1341 = vmul.f32 %v1270, %v1316
    %v1342 = vmul.f32 %v1271, %v1316
    %v1343 = vmul.f32 %v1272, %v1316
    %v1344 = vmul.f32 %v1273, %v1316
    %v1345 = vmul.f32 %v1274, %v1316
    %v1346 = vmul.f32 %v1275, %v1316
    %v1347 = vmul.f32 %v1276, %v1316
    %v1348 = vmul.f32 %v1277, %v1316
    %v1349 = vmul.f32 %v1278, %v1316
    %v1350 = vmul.f32 %v1279, %v1316
    %v1351 = vmul.f32 %v1280, %v1316
    %v1352 = vmul.f32 %v1281, %v1316
    %v1353 = vmul.f32 %v1282, %v1316
    %v1354 = vmul.f32 %v1283, %v1316
    %v1355 = vmul.f32 %v1284, %v1316
    %v1356 = vmul.f32 %v1285, %v1316
    %v1357 = vmul.f32 %v1286, %v1316
    %v1358 = vmul.f32 %v1287, %v1316
    %v1359 = vmul.f32 %v1288, %v1316
    %v1360 = vmul.f32 %v1289, %v1316
    %v1361 = vmul.f32 %v1290, %v1316
    %v1362 = vmul.f32 %v1291, %v1316
    %v1363 = vmul.f32 %v1292, %v1316
    %v1364 = vmul.f32 %v1293, %v1316
    %v1365 = vmul.f32 %v1294, %v1316
    %v1366 = vmul.f32 %v1295, %v1316
    %v1367 = vmul.f32 %v1296, %v1316
    %v1368 = vmul.f32 %v1297, %v1316
    %v1369 = vmul.f32 %v1298, %v1316
    %v1370 = vmul.f32 %v1299, %v1316
    %v1371 = vmul.f32 %v1300, %v1316
    %v1372 = vmul.f32 %v1301, %v1316
    %v1373 = vmul.f32 %v1302, %v1316
    %v1374 = vmul.f32 %v1303, %v1316
    %v1375 = vmul.f32 %v1304, %v1316
    %v1376 = vmul.f32 %v1305, %v1316
    %v1377 = vmul.f32 %v1306, %v1316
    %v1378 = vmul.f32 %v1307, %v1316
    %v1379 = vmul.f32 %v1308, %v1316
    %v1380 = vmul.f32 %v1309, %v1316
    %v1381 = vmul.f32 %v1310, %v1316
    %1382 = vadd.xlane.f32.xlu0 %v1318
    %v1383 = vpop.xlane.xlu0 %1382
    %1384 = vadd.xlane.f32.xlu0 %v1319
    %v1385 = vpop.xlane.xlu0 %1384
    %1386 = vadd.xlane.f32.xlu0 %v1320
    %v1387 = vpop.xlane.xlu0 %1386
    %1388 = vadd.xlane.f32.xlu0 %v1321
    %v1389 = vpop.xlane.xlu0 %1388
    %1390 = vadd.xlane.f32.xlu0 %v1322
    %v1391 = vpop.xlane.xlu0 %1390
    %1392 = vadd.xlane.f32.xlu0 %v1323
    %v1393 = vpop.xlane.xlu0 %1392
    %1394 = vadd.xlane.f32.xlu0 %v1324
    %v1395 = vpop.xlane.xlu0 %1394
    %1396 = vadd.xlane.f32.xlu0 %v1325
    %v1397 = vpop.xlane.xlu0 %1396
    %1398 = vadd.xlane.f32.xlu0 %v1326
    %v1399 = vpop.xlane.xlu0 %1398
    %1400 = vadd.xlane.f32.xlu0 %v1327
    %v1401 = vpop.xlane.xlu0 %1400
    %1402 = vadd.xlane.f32.xlu0 %v1328
    %v1403 = vpop.xlane.xlu0 %1402
    %1404 = vadd.xlane.f32.xlu0 %v1329
    %v1405 = vpop.xlane.xlu0 %1404
    %1406 = vadd.xlane.f32.xlu0 %v1330
    %v1407 = vpop.xlane.xlu0 %1406
    %1408 = vadd.xlane.f32.xlu0 %v1331
    %v1409 = vpop.xlane.xlu0 %1408
    %1410 = vadd.xlane.f32.xlu0 %v1332
    %v1411 = vpop.xlane.xlu0 %1410
    %1412 = vadd.xlane.f32.xlu0 %v1333
    %v1413 = vpop.xlane.xlu0 %1412
    %1414 = vadd.xlane.f32.xlu0 %v1334
    %v1415 = vpop.xlane.xlu0 %1414
    %1416 = vadd.xlane.f32.xlu0 %v1335
    %v1417 = vpop.xlane.xlu0 %1416
    %1418 = vadd.xlane.f32.xlu0 %v1336
    %v1419 = vpop.xlane.xlu0 %1418
    %1420 = vadd.xlane.f32.xlu0 %v1337
    %v1421 = vpop.xlane.xlu0 %1420
    %1422 = vadd.xlane.f32.xlu0 %v1338
    %v1423 = vpop.xlane.xlu0 %1422
    %1424 = vadd.xlane.f32.xlu0 %v1339
    %v1425 = vpop.xlane.xlu0 %1424
    %1426 = vadd.xlane.f32.xlu0 %v1340
    %v1427 = vpop.xlane.xlu0 %1426
    %1428 = vadd.xlane.f32.xlu0 %v1341
    %v1429 = vpop.xlane.xlu0 %1428
    %1430 = vadd.xlane.f32.xlu0 %v1342
    %v1431 = vpop.xlane.xlu0 %1430
    %1432 = vadd.xlane.f32.xlu0 %v1343
    %v1433 = vpop.xlane.xlu0 %1432
    %1434 = vadd.xlane.f32.xlu0 %v1344
    %v1435 = vpop.xlane.xlu0 %1434
    %1436 = vadd.xlane.f32.xlu0 %v1345
    %v1437 = vpop.xlane.xlu0 %1436
    %1438 = vadd.xlane.f32.xlu0 %v1346
    %v1439 = vpop.xlane.xlu0 %1438
    %1440 = vadd.xlane.f32.xlu0 %v1347
    %v1441 = vpop.xlane.xlu0 %1440
    %1442 = vadd.xlane.f32.xlu0 %v1348
    %v1443 = vpop.xlane.xlu0 %1442
    %1444 = vadd.xlane.f32.xlu0 %v1349
    %v1445 = vpop.xlane.xlu0 %1444
    %1446 = vadd.xlane.f32.xlu0 %v1350
    %v1447 = vpop.xlane.xlu0 %1446
    %1448 = vadd.xlane.f32.xlu0 %v1351
    %v1449 = vpop.xlane.xlu0 %1448
    %1450 = vadd.xlane.f32.xlu0 %v1352
    %v1451 = vpop.xlane.xlu0 %1450
    %1452 = vadd.xlane.f32.xlu0 %v1353
    %v1453 = vpop.xlane.xlu0 %1452
    %1454 = vadd.xlane.f32.xlu0 %v1354
    %v1455 = vpop.xlane.xlu0 %1454
    %1456 = vadd.xlane.f32.xlu0 %v1355
    %v1457 = vpop.xlane.xlu0 %1456
    %1458 = vadd.xlane.f32.xlu0 %v1356
    %v1459 = vpop.xlane.xlu0 %1458
    %1460 = vadd.xlane.f32.xlu0 %v1357
    %v1461 = vpop.xlane.xlu0 %1460
    %1462 = vadd.xlane.f32.xlu0 %v1358
    %v1463 = vpop.xlane.xlu0 %1462
    %1464 = vadd.xlane.f32.xlu0 %v1359
    %v1465 = vpop.xlane.xlu0 %1464
    %1466 = vadd.xlane.f32.xlu0 %v1360
    %v1467 = vpop.xlane.xlu0 %1466
    %1468 = vadd.xlane.f32.xlu0 %v1361
    %v1469 = vpop.xlane.xlu0 %1468
    %1470 = vadd.xlane.f32.xlu0 %v1362
    %v1471 = vpop.xlane.xlu0 %1470
    %1472 = vadd.xlane.f32.xlu0 %v1363
    %v1473 = vpop.xlane.xlu0 %1472
    %1474 = vadd.xlane.f32.xlu0 %v1364
    %v1475 = vpop.xlane.xlu0 %1474
    %1476 = vadd.xlane.f32.xlu0 %v1365
    %v1477 = vpop.xlane.xlu0 %1476
    %1478 = vadd.xlane.f32.xlu0 %v1366
    %v1479 = vpop.xlane.xlu0 %1478
    %1480 = vadd.xlane.f32.xlu0 %v1367
    %v1481 = vpop.xlane.xlu0 %1480
    %1482 = vadd.xlane.f32.xlu0 %v1368
    %v1483 = vpop.xlane.xlu0 %1482
    %1484 = vadd.xlane.f32.xlu0 %v1369
    %v1485 = vpop.xlane.xlu0 %1484
    %1486 = vadd.xlane.f32.xlu0 %v1370
    %v1487 = vpop.xlane.xlu0 %1486
    %1488 = vadd.xlane.f32.xlu0 %v1371
    %v1489 = vpop.xlane.xlu0 %1488
    %1490 = vadd.xlane.f32.xlu0 %v1372
    %v1491 = vpop.xlane.xlu0 %1490
    %1492 = vadd.xlane.f32.xlu0 %v1373
    %v1493 = vpop.xlane.xlu0 %1492
    %1494 = vadd.xlane.f32.xlu0 %v1374
    %v1495 = vpop.xlane.xlu0 %1494
    %1496 = vadd.xlane.f32.xlu0 %v1375
    %v1497 = vpop.xlane.xlu0 %1496
    %1498 = vadd.xlane.f32.xlu0 %v1376
    %v1499 = vpop.xlane.xlu0 %1498
    %1500 = vadd.xlane.f32.xlu0 %v1377
    %v1501 = vpop.xlane.xlu0 %1500
    %1502 = vadd.xlane.f32.xlu0 %v1378
    %v1503 = vpop.xlane.xlu0 %1502
    %1504 = vadd.xlane.f32.xlu0 %v1379
    %v1505 = vpop.xlane.xlu0 %1504
    %1506 = vadd.xlane.f32.xlu0 %v1380
    %v1507 = vpop.xlane.xlu0 %1506
    %1508 = vadd.xlane.f32.xlu0 %v1381
    %v1509 = vpop.xlane.xlu0 %1508
    %v1510 = vld [vmem:[#allocation2] sm:$0x1]
    %v1512 = vlaneseq
    %v1513 = vshrl.u32 %v1512, 7
    %v1514 = vsub.s32 0, %v1513
    %v1515 = vrot.slane %v1510, %v1514
    %v1517 = vadd.f32 %v1383, %v1515
    %v1518 = vadd.f32 %v1385, %v1515
    %v1519 = vadd.f32 %v1387, %v1515
    %v1520 = vadd.f32 %v1389, %v1515
    %v1521 = vadd.f32 %v1391, %v1515
    %v1522 = vadd.f32 %v1393, %v1515
    %v1523 = vadd.f32 %v1395, %v1515
    %v1524 = vadd.f32 %v1397, %v1515
    %v1525 = vadd.f32 %v1399, %v1515
    %v1526 = vadd.f32 %v1401, %v1515
    %v1527 = vadd.f32 %v1403, %v1515
    %v1528 = vadd.f32 %v1405, %v1515
    %v1529 = vadd.f32 %v1407, %v1515
    %v1530 = vadd.f32 %v1409, %v1515
    %v1531 = vadd.f32 %v1411, %v1515
    %v1532 = vadd.f32 %v1413, %v1515
    %v1533 = vadd.f32 %v1415, %v1515
    %v1534 = vadd.f32 %v1417, %v1515
    %v1535 = vadd.f32 %v1419, %v1515
    %v1536 = vadd.f32 %v1421, %v1515
    %v1537 = vadd.f32 %v1423, %v1515
    %v1538 = vadd.f32 %v1425, %v1515
    %v1539 = vadd.f32 %v1427, %v1515
    %v1540 = vadd.f32 %v1429, %v1515
    %v1541 = vadd.f32 %v1431, %v1515
    %v1542 = vadd.f32 %v1433, %v1515
    %v1543 = vadd.f32 %v1435, %v1515
    %v1544 = vadd.f32 %v1437, %v1515
    %v1545 = vadd.f32 %v1439, %v1515
    %v1546 = vadd.f32 %v1441, %v1515
    %v1547 = vadd.f32 %v1443, %v1515
    %v1548 = vadd.f32 %v1445, %v1515
    %v1549 = vadd.f32 %v1447, %v1515
    %v1550 = vadd.f32 %v1449, %v1515
    %v1551 = vadd.f32 %v1451, %v1515
    %v1552 = vadd.f32 %v1453, %v1515
    %v1553 = vadd.f32 %v1455, %v1515
    %v1554 = vadd.f32 %v1457, %v1515
    %v1555 = vadd.f32 %v1459, %v1515
    %v1556 = vadd.f32 %v1461, %v1515
    %v1557 = vadd.f32 %v1463, %v1515
    %v1558 = vadd.f32 %v1465, %v1515
    %v1559 = vadd.f32 %v1467, %v1515
    %v1560 = vadd.f32 %v1469, %v1515
    %v1561 = vadd.f32 %v1471, %v1515
    %v1562 = vadd.f32 %v1473, %v1515
    %v1563 = vadd.f32 %v1475, %v1515
    %v1564 = vadd.f32 %v1477, %v1515
    %v1565 = vadd.f32 %v1479, %v1515
    %v1566 = vadd.f32 %v1481, %v1515
    %v1567 = vadd.f32 %v1483, %v1515
    %v1568 = vadd.f32 %v1485, %v1515
    %v1569 = vadd.f32 %v1487, %v1515
    %v1570 = vadd.f32 %v1489, %v1515
    %v1571 = vadd.f32 %v1491, %v1515
    %v1572 = vadd.f32 %v1493, %v1515
    %v1573 = vadd.f32 %v1495, %v1515
    %v1574 = vadd.f32 %v1497, %v1515
    %v1575 = vadd.f32 %v1499, %v1515
    %v1576 = vadd.f32 %v1501, %v1515
    %v1577 = vadd.f32 %v1503, %v1515
    %v1578 = vadd.f32 %v1505, %v1515
    %v1579 = vadd.f32 %v1507, %v1515
    %v1580 = vadd.f32 %v1509, %v1515
    %vm1581 = vcmask 7168
    %1582 = vst.msk [vmem:[%s5] sm:$0xff] %vm1581, %v1517
    %1583 = vst.msk [vmem:[%s5 + $0x8] sm:$0xff] %vm1581, %v1518
    %1584 = vst.msk [vmem:[%s5 + $0x10] sm:$0xff] %vm1581, %v1519
    %1585 = vst.msk [vmem:[%s5 + $0x18] sm:$0xff] %vm1581, %v1520
    %1586 = vst.msk [vmem:[%s5 + $0x20] sm:$0xff] %vm1581, %v1521
    %1587 = vst.msk [vmem:[%s5 + $0x28] sm:$0xff] %vm1581, %v1522
    %1588 = vst.msk [vmem:[%s5 + $0x30] sm:$0xff] %vm1581, %v1523
    %1589 = vst.msk [vmem:[%s5 + $0x38] sm:$0xff] %vm1581, %v1524
    %1590 = vst.msk [vmem:[%s5 + $0x40] sm:$0xff] %vm1581, %v1525
    %1591 = vst.msk [vmem:[%s5 + $0x48] sm:$0xff] %vm1581, %v1526
    %1592 = vst.msk [vmem:[%s5 + $0x50] sm:$0xff] %vm1581, %v1527
    %1593 = vst.msk [vmem:[%s5 + $0x58] sm:$0xff] %vm1581, %v1528
    %1594 = vst.msk [vmem:[%s5 + $0x60] sm:$0xff] %vm1581, %v1529
    %1595 = vst.msk [vmem:[%s5 + $0x68] sm:$0xff] %vm1581, %v1530
    %1596 = vst.msk [vmem:[%s5 + $0x70] sm:$0xff] %vm1581, %v1531
    %1597 = vst.msk [vmem:[%s5 + $0x78] sm:$0xff] %vm1581, %v1532
    %1598 = vst.msk [vmem:[%s5 + $0x80] sm:$0xff] %vm1581, %v1533
    %1599 = vst.msk [vmem:[%s5 + $0x88] sm:$0xff] %vm1581, %v1534
    %1600 = vst.msk [vmem:[%s5 + $0x90] sm:$0xff] %vm1581, %v1535
    %1601 = vst.msk [vmem:[%s5 + $0x98] sm:$0xff] %vm1581, %v1536
    %1602 = vst.msk [vmem:[%s5 + $0xa0] sm:$0xff] %vm1581, %v1537
    %1603 = vst.msk [vmem:[%s5 + $0xa8] sm:$0xff] %vm1581, %v1538
    %1604 = vst.msk [vmem:[%s5 + $0xb0] sm:$0xff] %vm1581, %v1539
    %1605 = vst.msk [vmem:[%s5 + $0xb8] sm:$0xff] %vm1581, %v1540
    %1606 = vst.msk [vmem:[%s5 + $0xc0] sm:$0xff] %vm1581, %v1541
    %1607 = vst.msk [vmem:[%s5 + $0xc8] sm:$0xff] %vm1581, %v1542
    %1608 = vst.msk [vmem:[%s5 + $0xd0] sm:$0xff] %vm1581, %v1543
    %1609 = vst.msk [vmem:[%s5 + $0xd8] sm:$0xff] %vm1581, %v1544
    %1610 = vst.msk [vmem:[%s5 + $0xe0] sm:$0xff] %vm1581, %v1545
    %1611 = vst.msk [vmem:[%s5 + $0xe8] sm:$0xff] %vm1581, %v1546
    %1612 = vst.msk [vmem:[%s5 + $0xf0] sm:$0xff] %vm1581, %v1547
    %1613 = vst.msk [vmem:[%s5 + $0xf8] sm:$0xff] %vm1581, %v1548
    %1614 = vst.msk [vmem:[%s5 + $0x100] sm:$0xff] %vm1581, %v1549
    %1615 = vst.msk [vmem:[%s5 + $0x108] sm:$0xff] %vm1581, %v1550
    %1616 = vst.msk [vmem:[%s5 + $0x110] sm:$0xff] %vm1581, %v1551
    %1617 = vst.msk [vmem:[%s5 + $0x118] sm:$0xff] %vm1581, %v1552
    %1618 = vst.msk [vmem:[%s5 + $0x120] sm:$0xff] %vm1581, %v1553
    %1619 = vst.msk [vmem:[%s5 + $0x128] sm:$0xff] %vm1581, %v1554
    %1620 = vst.msk [vmem:[%s5 + $0x130] sm:$0xff] %vm1581, %v1555
    %1621 = vst.msk [vmem:[%s5 + $0x138] sm:$0xff] %vm1581, %v1556
    %1622 = vst.msk [vmem:[%s5 + $0x140] sm:$0xff] %vm1581, %v1557
    %1623 = vst.msk [vmem:[%s5 + $0x148] sm:$0xff] %vm1581, %v1558
    %1624 = vst.msk [vmem:[%s5 + $0x150] sm:$0xff] %vm1581, %v1559
    %1625 = vst.msk [vmem:[%s5 + $0x158] sm:$0xff] %vm1581, %v1560
    %1626 = vst.msk [vmem:[%s5 + $0x160] sm:$0xff] %vm1581, %v1561
    %1627 = vst.msk [vmem:[%s5 + $0x168] sm:$0xff] %vm1581, %v1562
    %1628 = vst.msk [vmem:[%s5 + $0x170] sm:$0xff] %vm1581, %v1563
    %1629 = vst.msk [vmem:[%s5 + $0x178] sm:$0xff] %vm1581, %v1564
    %1630 = vst.msk [vmem:[%s5 + $0x180] sm:$0xff] %vm1581, %v1565
    %1631 = vst.msk [vmem:[%s5 + $0x188] sm:$0xff] %vm1581, %v1566
    %1632 = vst.msk [vmem:[%s5 + $0x190] sm:$0xff] %vm1581, %v1567
    %1633 = vst.msk [vmem:[%s5 + $0x198] sm:$0xff] %vm1581, %v1568
    %1634 = vst.msk [vmem:[%s5 + $0x1a0] sm:$0xff] %vm1581, %v1569
    %1635 = vst.msk [vmem:[%s5 + $0x1a8] sm:$0xff] %vm1581, %v1570
    %1636 = vst.msk [vmem:[%s5 + $0x1b0] sm:$0xff] %vm1581, %v1571
    %1637 = vst.msk [vmem:[%s5 + $0x1b8] sm:$0xff] %vm1581, %v1572
    %1638 = vst.msk [vmem:[%s5 + $0x1c0] sm:$0xff] %vm1581, %v1573
    %1639 = vst.msk [vmem:[%s5 + $0x1c8] sm:$0xff] %vm1581, %v1574
    %1640 = vst.msk [vmem:[%s5 + $0x1d0] sm:$0xff] %vm1581, %v1575
    %1641 = vst.msk [vmem:[%s5 + $0x1d8] sm:$0xff] %vm1581, %v1576
    %1642 = vst.msk [vmem:[%s5 + $0x1e0] sm:$0xff] %vm1581, %v1577
    %1643 = vst.msk [vmem:[%s5 + $0x1e8] sm:$0xff] %vm1581, %v1578
    %1644 = vst.msk [vmem:[%s5 + $0x1f0] sm:$0xff] %vm1581, %v1579
    %1645 = vst.msk [vmem:[%s5 + $0x1f8] sm:$0xff] %vm1581, %v1580
    // Predicated region
    $region30: #{tpu_custom_call.1} parent=1 // pred_check
      _
    $region31: #{tpu_custom_call.1} parent=1 // pred_check_branch
      %1647 = sbr.rel (0) target = $region33
    $region32: #{tpu_custom_call.1} parent=1 // pred_region
      _
    $region33: #{tpu_custom_call.1} parent=1 // pred_fallthru
      _
    // Predicated region
    $region34: #{tpu_custom_call.1} parent=1 // pred_check
      _
    $region35: #{tpu_custom_call.1} parent=1 // pred_check_branch
      %1649 = sbr.rel (0) target = $region37
    $region36: #{tpu_custom_call.1} parent=1 // pred_region
      _
    $region37: #{tpu_custom_call.1} parent=1 // pred_fallthru
      _
    %1650 = vsyncpa [#allocation4], 1
    %1651 = vsyncpa [#allocation6], 1

</llo_original>
